<compile_context>
chip_gen: v7x
topology: tpu7x:2x2x1
jax: 0.10.0
libtpu: 0.0.40
codegen_flags: <defaults>
</compile_context>

<pallas_src>
import functools

import jax
import jax.numpy as jnp
from jax.experimental import pallas as pl
from jax.experimental.pallas import tpu as pltpu


# ------------------------------ Pallas kernel -------------------------------

def _make_unet_up_kernel(H, W, Cin, Cout, Cskip):
    HW = H * W
    n_el = float(4 * HW)          # (2H)*(2W) elements per (sample, channel)

    def kernel(xp_ref, w_ref, skip_ref, g_ref, b_ref, o_ref):
        # ---- 4 output-phase stride-1 matmuls of ConvTranspose2d(4, s=2, p=1)
        # y[2m+ph, 2l+pw, co] = sum_{dh in {ph-1,ph}, dw in {pw-1,pw}, ci}
        #     x[m+dh, l+dw, ci] * w_t[ci, co, ph-2dh+1, pw-2dw+1]
        ys = []
        total = jnp.zeros((1, Cout), jnp.float32)
        for ph in (0, 1):
            for pw in (0, 1):
                taps = []
                for dh in (ph - 1, ph):
                    for dw in (pw - 1, pw):
                        t = xp_ref[0, 1 + dh:1 + dh + H, 1 + dw:1 + dw + W, :]
                        taps.append(t.reshape(HW, Cin))
                a = jnp.concatenate(taps, axis=-1)            # (HW, 4*Cin) bf16
                y = jnp.dot(a, w_ref[2 * ph + pw],
                            preferred_element_type=jnp.float32)   # (HW, Cout)
                ys.append(y)
                total = total + jnp.sum(y, axis=0, keepdims=True)

        # ---- InstanceNorm2d statistics in f32 over all 4 phases (= all HW).
        mean = total / n_el
        ssq = jnp.zeros((1, Cout), jnp.float32)
        for y in ys:
            d = y - mean
            ssq = ssq + jnp.sum(d * d, axis=0, keepdims=True)
        inv = jax.lax.rsqrt(ssq / n_el + 1e-5)                # biased var
        scale = inv * g_ref[...]                              # (1, Cout)
        shift = b_ref[...] - mean * scale                     # (1, Cout)

        # ---- Normalize, interleave phases, concat skip.  Store layout
        # (H, 2, W, 2*(Cout+Cskip)) so the outer reshape to (2H, 2W, C) is free.
        for ph in (0, 1):
            sk = skip_ref[0, :, ph, :, :]                     # (H, W, 2*Cskip)
            parts = []
            for pw in (0, 1):
                yn = ys[2 * ph + pw] * scale + shift          # (HW, Cout) f32
                parts.append(yn.reshape(H, W, Cout).astype(o_ref.dtype))
                parts.append(sk[:, :, pw * Cskip:(pw + 1) * Cskip])
            o_ref[0, :, ph, :, :] = jnp.concatenate(parts, axis=-1)

    return kernel


# ----------------------- phase weights for the transposed conv --------------

def _phase_weights(w_t):
    """w_t: PyTorch ConvTranspose2d weight (Cin, Cout, 4, 4) -> (4, 4*Cin, Cout)."""
    blocks = []
    for ph in (0, 1):
        for pw in (0, 1):
            rows = []
            for dh in (ph - 1, ph):
                for dw in (pw - 1, pw):
                    rows.append(w_t[:, :, ph - 2 * dh + 1, pw - 2 * dw + 1])
            blocks.append(jnp.concatenate(rows, axis=0))      # (4*Cin, Cout)
    return jnp.stack(blocks, axis=0)                          # (4, 4*Cin, Cout)


# --------------------------------- forward ----------------------------------

@jax.jit
def unet_up_forward(x_nchw, skip_nchw, w_t, gamma, beta):
    """UNetUp.forward: cat(InstanceNorm(ConvT(ReLU(x))), skip), NCHW in/out."""
    x = jnp.transpose(x_nchw, (0, 2, 3, 1)).astype(jnp.float32)
    skip = jnp.transpose(skip_nchw, (0, 2, 3, 1)).astype(jnp.float32)
    N, H, W, Cin = x.shape
    Cout = w_t.shape[1]
    Cskip = skip.shape[-1]
    Ctot = Cout + Cskip

    # ReLU + bf16 cast once; pad the 1-pixel transposed-conv halo once.
    xp = jnp.pad(jnp.maximum(x, 0.0).astype(jnp.bfloat16),
                 ((0, 0), (1, 1), (1, 1), (0, 0)))            # (N, H+2, W+2, Cin)
    w_phase = _phase_weights(w_t).astype(jnp.bfloat16)        # (4, 4*Cin, Cout)
    # Free reshape: (N, 2H, 2W, Cskip) -> (N, H, 2, W, 2*Cskip)
    skip_r = skip.reshape(N, H, 2, W, 2 * Cskip)

    kernel = _make_unet_up_kernel(H, W, Cin, Cout, Cskip)
    out = pl.pallas_call(
        kernel,
        out_shape=jax.ShapeDtypeStruct((N, H, 2, W, 2 * Ctot), jnp.float32),
        grid=(N,),
        in_specs=[
            pl.BlockSpec((1, H + 2, W + 2, Cin), lambda n: (n, 0, 0, 0)),
            pl.BlockSpec((4, 4 * Cin, Cout), lambda n: (0, 0, 0)),
            pl.BlockSpec((1, H, 2, W, 2 * Cskip), lambda n: (n, 0, 0, 0, 0)),
            pl.BlockSpec((1, Cout), lambda n: (0, 0)),
            pl.BlockSpec((1, Cout), lambda n: (0, 0)),
        ],
        out_specs=pl.BlockSpec((1, H, 2, W, 2 * Ctot),
                               lambda n: (n, 0, 0, 0, 0)),
        compiler_params=pltpu.CompilerParams(
            dimension_semantics=("parallel",),
            vmem_limit_bytes=32 * 1024 * 1024),
    )(xp, w_phase, skip_r, gamma.reshape(1, Cout), beta.reshape(1, Cout))

    # Free (contiguity-preserving) reshape, then NCHW interface transpose.
    out = out.reshape(N, 2 * H, 2 * W, Ctot)
    return jnp.transpose(out, (0, 3, 1, 2))


# ----------------------------- pure-JAX reference ----------------------------

def _reference(x_nchw, skip_nchw, w_t, gamma, beta):
    x = jnp.transpose(jnp.maximum(x_nchw, 0.0), (0, 2, 3, 1))
    w_flip = jnp.transpose(w_t[:, :, ::-1, ::-1], (2, 3, 0, 1))     # HWIO
    h = jax.lax.conv_general_dilated(
        x, w_flip, window_strides=(1, 1), padding=((2, 2), (2, 2)),
        lhs_dilation=(2, 2), dimension_numbers=("NHWC", "HWIO", "NHWC"),
        precision=jax.lax.Precision.HIGHEST)
    mean = jnp.mean(h, axis=(1, 2), keepdims=True)
    var = jnp.mean((h - mean) ** 2, axis=(1, 2), keepdims=True)
    hn = (h - mean) * jax.lax.rsqrt(var + 1e-5) * gamma + beta
    out = jnp.concatenate([hn, jnp.transpose(skip_nchw, (0, 2, 3, 1))], axis=-1)
    return jnp.transpose(out, (0, 3, 1, 2))


# ------------------------------------ main -----------------------------------

if __name__ == "__main__":
    key = jax.random.PRNGKey(0)
    kx, ks, kw = jax.random.split(key, 3)

    N, Cin, Cout, Cskip, H, W = 2, 32, 16, 16, 8, 8
    x = jax.random.normal(kx, (N, Cin, H, W), jnp.float32)
    skip = jax.random.normal(ks, (N, Cskip, 2 * H, 2 * W), jnp.float32)
    w_t = jax.random.normal(kw, (Cin, Cout, 4, 4), jnp.float32) * 0.05
    gamma = jnp.ones((Cout,), jnp.float32)     # InstanceNorm2d(affine=True) init
    beta = jnp.zeros((Cout,), jnp.float32)

    y = jax.block_until_ready(unet_up_forward(x, skip, w_t, gamma, beta))

    assert y.shape == (N, Cout + Cskip, 2 * H, 2 * W), y.shape
    assert bool(jnp.all(jnp.isfinite(y)))

    ref = _reference(x, skip, w_t, gamma, beta)
    max_err = float(jnp.max(jnp.abs(y - ref)))
    assert max_err < 1e-1, f"max abs error vs reference: {max_err}"

    print("KERNEL_OK")
</pallas_src>

<mosaic_0001>
module attributes {stable_mosaic.version = 11 : i64} {
  func.func @kernel(%arg0: i32, %arg1: memref<1x10x10x32xbf16, #tpu.memory_space<vmem>>, %arg2: memref<4x128x16xbf16, #tpu.memory_space<vmem>>, %arg3: memref<1x8x2x8x32xf32, #tpu.memory_space<vmem>>, %arg4: memref<1x16xf32, #tpu.memory_space<vmem>>, %arg5: memref<1x16xf32, #tpu.memory_space<vmem>>, %arg6: memref<1x8x2x8x64xf32, #tpu.memory_space<vmem>>) attributes {dimension_semantics = [#tpu.dimension_semantics<parallel>], iteration_bounds = array<i64: 2>, scalar_prefetch = 0 : i64, scratch_operands = 0 : i64, tpu.core_type = #tpu.core_type<tc>, window_params = [{transform_indices = @transform_0, window_bounds = array<i64: 1, 10, 10, 32>}, {pipeline_mode = #tpu.pipeline_mode<synchronous>, transform_indices = @transform_1, window_bounds = array<i64: 4, 128, 16>}, {transform_indices = @transform_2, window_bounds = array<i64: 1, 8, 2, 8, 32>}, {pipeline_mode = #tpu.pipeline_mode<synchronous>, transform_indices = @transform_3, window_bounds = array<i64: 1, 16>}, {pipeline_mode = #tpu.pipeline_mode<synchronous>, transform_indices = @transform_4, window_bounds = array<i64: 1, 16>}, {transform_indices = @transform_5, window_bounds = array<i64: 1, 8, 2, 8, 64>}]} {
    %cst = arith.constant 0.000000e+00 : f32
    %0 = vector.broadcast %cst : f32 to vector<1x16xf32>
    %c0 = arith.constant 0 : index
    %c0_0 = arith.constant 0 : index
    %c0_1 = arith.constant 0 : index
    %c0_2 = arith.constant 0 : index
    %1 = vector.load %arg1[%c0, %c0_0, %c0_1, %c0_2] : memref<1x10x10x32xbf16, #tpu.memory_space<vmem>>, vector<1x8x8x32xbf16>
    %2 = vector.shape_cast %1 : vector<1x8x8x32xbf16> to vector<8x8x32xbf16>
    %3 = vector.shape_cast %2 : vector<8x8x32xbf16> to vector<64x32xbf16>
    %c0_3 = arith.constant 0 : index
    %c0_4 = arith.constant 0 : index
    %c1 = arith.constant 1 : index
    %c0_5 = arith.constant 0 : index
    %4 = vector.load %arg1[%c0_3, %c0_4, %c1, %c0_5] : memref<1x10x10x32xbf16, #tpu.memory_space<vmem>>, vector<1x8x8x32xbf16>
    %5 = vector.shape_cast %4 : vector<1x8x8x32xbf16> to vector<8x8x32xbf16>
    %6 = vector.shape_cast %5 : vector<8x8x32xbf16> to vector<64x32xbf16>
    %c0_6 = arith.constant 0 : index
    %c1_7 = arith.constant 1 : index
    %c0_8 = arith.constant 0 : index
    %c0_9 = arith.constant 0 : index
    %7 = vector.load %arg1[%c0_6, %c1_7, %c0_8, %c0_9] : memref<1x10x10x32xbf16, #tpu.memory_space<vmem>>, vector<1x8x8x32xbf16>
    %8 = vector.shape_cast %7 : vector<1x8x8x32xbf16> to vector<8x8x32xbf16>
    %9 = vector.shape_cast %8 : vector<8x8x32xbf16> to vector<64x32xbf16>
    %c0_10 = arith.constant 0 : index
    %c1_11 = arith.constant 1 : index
    %c1_12 = arith.constant 1 : index
    %c0_13 = arith.constant 0 : index
    %10 = vector.load %arg1[%c0_10, %c1_11, %c1_12, %c0_13] : memref<1x10x10x32xbf16, #tpu.memory_space<vmem>>, vector<1x8x8x32xbf16>
    %11 = vector.shape_cast %10 : vector<1x8x8x32xbf16> to vector<8x8x32xbf16>
    %12 = vector.shape_cast %11 : vector<8x8x32xbf16> to vector<64x32xbf16>
    %13 = tpu.concatenate %3, %6, %9, %12 in 1 : vector<64x32xbf16>, vector<64x32xbf16>, vector<64x32xbf16>, vector<64x32xbf16> -> vector<64x128xbf16>
    %c0_14 = arith.constant 0 : index
    %c0_15 = arith.constant 0 : index
    %c0_16 = arith.constant 0 : index
    %14 = vector.load %arg2[%c0_14, %c0_15, %c0_16] : memref<4x128x16xbf16, #tpu.memory_space<vmem>>, vector<1x128x16xbf16>
    %15 = vector.shape_cast %14 : vector<1x128x16xbf16> to vector<128x16xbf16>
    %cst_17 = arith.constant dense<0.000000e+00> : vector<64x16xf32>
    %16 = tpu.matmul %13, %15, %cst_17 {dimension_numbers = #tpu.dot_dimension_numbers<[1], [0], [0], [1], [0, 0, 1, 1], [], []>} : vector<64x128xbf16>, vector<128x16xbf16>, vector<64x16xf32> -> vector<64x16xf32>
    %cst_18 = arith.constant dense<0.000000e+00> : vector<16xf32>
    %17 = vector.multi_reduction <add>, %16, %cst_18 [0] : vector<64x16xf32> to vector<16xf32>
    %18 = vector.shape_cast %17 : vector<16xf32> to vector<1x16xf32>
    %19 = arith.addf %0, %18 : vector<1x16xf32>
    %c0_19 = arith.constant 0 : index
    %c0_20 = arith.constant 0 : index
    %c1_21 = arith.constant 1 : index
    %c0_22 = arith.constant 0 : index
    %20 = vector.load %arg1[%c0_19, %c0_20, %c1_21, %c0_22] : memref<1x10x10x32xbf16, #tpu.memory_space<vmem>>, vector<1x8x8x32xbf16>
    %21 = vector.shape_cast %20 : vector<1x8x8x32xbf16> to vector<8x8x32xbf16>
    %22 = vector.shape_cast %21 : vector<8x8x32xbf16> to vector<64x32xbf16>
    %c0_23 = arith.constant 0 : index
    %c0_24 = arith.constant 0 : index
    %c2 = arith.constant 2 : index
    %c0_25 = arith.constant 0 : index
    %23 = vector.load %arg1[%c0_23, %c0_24, %c2, %c0_25] : memref<1x10x10x32xbf16, #tpu.memory_space<vmem>>, vector<1x8x8x32xbf16>
    %24 = vector.shape_cast %23 : vector<1x8x8x32xbf16> to vector<8x8x32xbf16>
    %25 = vector.shape_cast %24 : vector<8x8x32xbf16> to vector<64x32xbf16>
    %c0_26 = arith.constant 0 : index
    %c1_27 = arith.constant 1 : index
    %c1_28 = arith.constant 1 : index
    %c0_29 = arith.constant 0 : index
    %26 = vector.load %arg1[%c0_26, %c1_27, %c1_28, %c0_29] : memref<1x10x10x32xbf16, #tpu.memory_space<vmem>>, vector<1x8x8x32xbf16>
    %27 = vector.shape_cast %26 : vector<1x8x8x32xbf16> to vector<8x8x32xbf16>
    %28 = vector.shape_cast %27 : vector<8x8x32xbf16> to vector<64x32xbf16>
    %c0_30 = arith.constant 0 : index
    %c1_31 = arith.constant 1 : index
    %c2_32 = arith.constant 2 : index
    %c0_33 = arith.constant 0 : index
    %29 = vector.load %arg1[%c0_30, %c1_31, %c2_32, %c0_33] : memref<1x10x10x32xbf16, #tpu.memory_space<vmem>>, vector<1x8x8x32xbf16>
    %30 = vector.shape_cast %29 : vector<1x8x8x32xbf16> to vector<8x8x32xbf16>
    %31 = vector.shape_cast %30 : vector<8x8x32xbf16> to vector<64x32xbf16>
    %32 = tpu.concatenate %22, %25, %28, %31 in 1 : vector<64x32xbf16>, vector<64x32xbf16>, vector<64x32xbf16>, vector<64x32xbf16> -> vector<64x128xbf16>
    %c1_34 = arith.constant 1 : index
    %c0_35 = arith.constant 0 : index
    %c0_36 = arith.constant 0 : index
    %33 = vector.load %arg2[%c1_34, %c0_35, %c0_36] : memref<4x128x16xbf16, #tpu.memory_space<vmem>>, vector<1x128x16xbf16>
    %34 = vector.shape_cast %33 : vector<1x128x16xbf16> to vector<128x16xbf16>
    %cst_37 = arith.constant dense<0.000000e+00> : vector<64x16xf32>
    %35 = tpu.matmul %32, %34, %cst_37 {dimension_numbers = #tpu.dot_dimension_numbers<[1], [0], [0], [1], [0, 0, 1, 1], [], []>} : vector<64x128xbf16>, vector<128x16xbf16>, vector<64x16xf32> -> vector<64x16xf32>
    %cst_38 = arith.constant dense<0.000000e+00> : vector<16xf32>
    %36 = vector.multi_reduction <add>, %35, %cst_38 [0] : vector<64x16xf32> to vector<16xf32>
    %37 = vector.shape_cast %36 : vector<16xf32> to vector<1x16xf32>
    %38 = arith.addf %19, %37 : vector<1x16xf32>
    %c0_39 = arith.constant 0 : index
    %c1_40 = arith.constant 1 : index
    %c0_41 = arith.constant 0 : index
    %c0_42 = arith.constant 0 : index
    %39 = vector.load %arg1[%c0_39, %c1_40, %c0_41, %c0_42] : memref<1x10x10x32xbf16, #tpu.memory_space<vmem>>, vector<1x8x8x32xbf16>
    %40 = vector.shape_cast %39 : vector<1x8x8x32xbf16> to vector<8x8x32xbf16>
    %41 = vector.shape_cast %40 : vector<8x8x32xbf16> to vector<64x32xbf16>
    %c0_43 = arith.constant 0 : index
    %c1_44 = arith.constant 1 : index
    %c1_45 = arith.constant 1 : index
    %c0_46 = arith.constant 0 : index
    %42 = vector.load %arg1[%c0_43, %c1_44, %c1_45, %c0_46] : memref<1x10x10x32xbf16, #tpu.memory_space<vmem>>, vector<1x8x8x32xbf16>
    %43 = vector.shape_cast %42 : vector<1x8x8x32xbf16> to vector<8x8x32xbf16>
    %44 = vector.shape_cast %43 : vector<8x8x32xbf16> to vector<64x32xbf16>
    %c0_47 = arith.constant 0 : index
    %c2_48 = arith.constant 2 : index
    %c0_49 = arith.constant 0 : index
    %c0_50 = arith.constant 0 : index
    %45 = vector.load %arg1[%c0_47, %c2_48, %c0_49, %c0_50] : memref<1x10x10x32xbf16, #tpu.memory_space<vmem>>, vector<1x8x8x32xbf16>
    %46 = vector.shape_cast %45 : vector<1x8x8x32xbf16> to vector<8x8x32xbf16>
    %47 = vector.shape_cast %46 : vector<8x8x32xbf16> to vector<64x32xbf16>
    %c0_51 = arith.constant 0 : index
    %c2_52 = arith.constant 2 : index
    %c1_53 = arith.constant 1 : index
    %c0_54 = arith.constant 0 : index
    %48 = vector.load %arg1[%c0_51, %c2_52, %c1_53, %c0_54] : memref<1x10x10x32xbf16, #tpu.memory_space<vmem>>, vector<1x8x8x32xbf16>
    %49 = vector.shape_cast %48 : vector<1x8x8x32xbf16> to vector<8x8x32xbf16>
    %50 = vector.shape_cast %49 : vector<8x8x32xbf16> to vector<64x32xbf16>
    %51 = tpu.concatenate %41, %44, %47, %50 in 1 : vector<64x32xbf16>, vector<64x32xbf16>, vector<64x32xbf16>, vector<64x32xbf16> -> vector<64x128xbf16>
    %c2_55 = arith.constant 2 : index
    %c0_56 = arith.constant 0 : index
    %c0_57 = arith.constant 0 : index
    %52 = vector.load %arg2[%c2_55, %c0_56, %c0_57] : memref<4x128x16xbf16, #tpu.memory_space<vmem>>, vector<1x128x16xbf16>
    %53 = vector.shape_cast %52 : vector<1x128x16xbf16> to vector<128x16xbf16>
    %cst_58 = arith.constant dense<0.000000e+00> : vector<64x16xf32>
    %54 = tpu.matmul %51, %53, %cst_58 {dimension_numbers = #tpu.dot_dimension_numbers<[1], [0], [0], [1], [0, 0, 1, 1], [], []>} : vector<64x128xbf16>, vector<128x16xbf16>, vector<64x16xf32> -> vector<64x16xf32>
    %cst_59 = arith.constant dense<0.000000e+00> : vector<16xf32>
    %55 = vector.multi_reduction <add>, %54, %cst_59 [0] : vector<64x16xf32> to vector<16xf32>
    %56 = vector.shape_cast %55 : vector<16xf32> to vector<1x16xf32>
    %57 = arith.addf %38, %56 : vector<1x16xf32>
    %c0_60 = arith.constant 0 : index
    %c1_61 = arith.constant 1 : index
    %c1_62 = arith.constant 1 : index
    %c0_63 = arith.constant 0 : index
    %58 = vector.load %arg1[%c0_60, %c1_61, %c1_62, %c0_63] : memref<1x10x10x32xbf16, #tpu.memory_space<vmem>>, vector<1x8x8x32xbf16>
    %59 = vector.shape_cast %58 : vector<1x8x8x32xbf16> to vector<8x8x32xbf16>
    %60 = vector.shape_cast %59 : vector<8x8x32xbf16> to vector<64x32xbf16>
    %c0_64 = arith.constant 0 : index
    %c1_65 = arith.constant 1 : index
    %c2_66 = arith.constant 2 : index
    %c0_67 = arith.constant 0 : index
    %61 = vector.load %arg1[%c0_64, %c1_65, %c2_66, %c0_67] : memref<1x10x10x32xbf16, #tpu.memory_space<vmem>>, vector<1x8x8x32xbf16>
    %62 = vector.shape_cast %61 : vector<1x8x8x32xbf16> to vector<8x8x32xbf16>
    %63 = vector.shape_cast %62 : vector<8x8x32xbf16> to vector<64x32xbf16>
    %c0_68 = arith.constant 0 : index
    %c2_69 = arith.constant 2 : index
    %c1_70 = arith.constant 1 : index
    %c0_71 = arith.constant 0 : index
    %64 = vector.load %arg1[%c0_68, %c2_69, %c1_70, %c0_71] : memref<1x10x10x32xbf16, #tpu.memory_space<vmem>>, vector<1x8x8x32xbf16>
    %65 = vector.shape_cast %64 : vector<1x8x8x32xbf16> to vector<8x8x32xbf16>
    %66 = vector.shape_cast %65 : vector<8x8x32xbf16> to vector<64x32xbf16>
    %c0_72 = arith.constant 0 : index
    %c2_73 = arith.constant 2 : index
    %c2_74 = arith.constant 2 : index
    %c0_75 = arith.constant 0 : index
    %67 = vector.load %arg1[%c0_72, %c2_73, %c2_74, %c0_75] : memref<1x10x10x32xbf16, #tpu.memory_space<vmem>>, vector<1x8x8x32xbf16>
    %68 = vector.shape_cast %67 : vector<1x8x8x32xbf16> to vector<8x8x32xbf16>
    %69 = vector.shape_cast %68 : vector<8x8x32xbf16> to vector<64x32xbf16>
    %70 = tpu.concatenate %60, %63, %66, %69 in 1 : vector<64x32xbf16>, vector<64x32xbf16>, vector<64x32xbf16>, vector<64x32xbf16> -> vector<64x128xbf16>
    %c3 = arith.constant 3 : index
    %c0_76 = arith.constant 0 : index
    %c0_77 = arith.constant 0 : index
    %71 = vector.load %arg2[%c3, %c0_76, %c0_77] : memref<4x128x16xbf16, #tpu.memory_space<vmem>>, vector<1x128x16xbf16>
    %72 = vector.shape_cast %71 : vector<1x128x16xbf16> to vector<128x16xbf16>
    %cst_78 = arith.constant dense<0.000000e+00> : vector<64x16xf32>
    %73 = tpu.matmul %70, %72, %cst_78 {dimension_numbers = #tpu.dot_dimension_numbers<[1], [0], [0], [1], [0, 0, 1, 1], [], []>} : vector<64x128xbf16>, vector<128x16xbf16>, vector<64x16xf32> -> vector<64x16xf32>
    %cst_79 = arith.constant dense<0.000000e+00> : vector<16xf32>
    %74 = vector.multi_reduction <add>, %73, %cst_79 [0] : vector<64x16xf32> to vector<16xf32>
    %75 = vector.shape_cast %74 : vector<16xf32> to vector<1x16xf32>
    %76 = arith.addf %57, %75 : vector<1x16xf32>
    %cst_80 = arith.constant 2.560000e+02 : f32
    %77 = vector.broadcast %cst_80 : f32 to vector<1x16xf32>
    %78 = arith.divf %76, %77 : vector<1x16xf32>
    %cst_81 = arith.constant 0.000000e+00 : f32
    %79 = vector.broadcast %cst_81 : f32 to vector<1x16xf32>
    %80 = vector.broadcast %78 : vector<1x16xf32> to vector<64x16xf32>
    %81 = arith.subf %16, %80 : vector<64x16xf32>
    %82 = arith.mulf %81, %81 : vector<64x16xf32>
    %cst_82 = arith.constant dense<0.000000e+00> : vector<16xf32>
    %83 = vector.multi_reduction <add>, %82, %cst_82 [0] : vector<64x16xf32> to vector<16xf32>
    %84 = vector.shape_cast %83 : vector<16xf32> to vector<1x16xf32>
    %85 = arith.addf %79, %84 : vector<1x16xf32>
    %86 = vector.broadcast %78 : vector<1x16xf32> to vector<64x16xf32>
    %87 = arith.subf %35, %86 : vector<64x16xf32>
    %88 = arith.mulf %87, %87 : vector<64x16xf32>
    %cst_83 = arith.constant dense<0.000000e+00> : vector<16xf32>
    %89 = vector.multi_reduction <add>, %88, %cst_83 [0] : vector<64x16xf32> to vector<16xf32>
    %90 = vector.shape_cast %89 : vector<16xf32> to vector<1x16xf32>
    %91 = arith.addf %85, %90 : vector<1x16xf32>
    %92 = vector.broadcast %78 : vector<1x16xf32> to vector<64x16xf32>
    %93 = arith.subf %54, %92 : vector<64x16xf32>
    %94 = arith.mulf %93, %93 : vector<64x16xf32>
    %cst_84 = arith.constant dense<0.000000e+00> : vector<16xf32>
    %95 = vector.multi_reduction <add>, %94, %cst_84 [0] : vector<64x16xf32> to vector<16xf32>
    %96 = vector.shape_cast %95 : vector<16xf32> to vector<1x16xf32>
    %97 = arith.addf %91, %96 : vector<1x16xf32>
    %98 = vector.broadcast %78 : vector<1x16xf32> to vector<64x16xf32>
    %99 = arith.subf %73, %98 : vector<64x16xf32>
    %100 = arith.mulf %99, %99 : vector<64x16xf32>
    %cst_85 = arith.constant dense<0.000000e+00> : vector<16xf32>
    %101 = vector.multi_reduction <add>, %100, %cst_85 [0] : vector<64x16xf32> to vector<16xf32>
    %102 = vector.shape_cast %101 : vector<16xf32> to vector<1x16xf32>
    %103 = arith.addf %97, %102 : vector<1x16xf32>
    %cst_86 = arith.constant 2.560000e+02 : f32
    %104 = vector.broadcast %cst_86 : f32 to vector<1x16xf32>
    %105 = arith.divf %103, %104 : vector<1x16xf32>
    %cst_87 = arith.constant 9.99999974E-6 : f32
    %106 = vector.broadcast %cst_87 : f32 to vector<1x16xf32>
    %107 = arith.addf %105, %106 : vector<1x16xf32>
    %108 = math.rsqrt %107 : vector<1x16xf32>
    %c0_88 = arith.constant 0 : index
    %c0_89 = arith.constant 0 : index
    %109 = vector.load %arg4[%c0_88, %c0_89] : memref<1x16xf32, #tpu.memory_space<vmem>>, vector<1x16xf32>
    %110 = arith.mulf %108, %109 : vector<1x16xf32>
    %c0_90 = arith.constant 0 : index
    %c0_91 = arith.constant 0 : index
    %111 = vector.load %arg5[%c0_90, %c0_91] : memref<1x16xf32, #tpu.memory_space<vmem>>, vector<1x16xf32>
    %112 = arith.mulf %78, %110 : vector<1x16xf32>
    %113 = arith.subf %111, %112 : vector<1x16xf32>
    %c0_92 = arith.constant 0 : index
    %c0_93 = arith.constant 0 : index
    %c0_94 = arith.constant 0 : index
    %c0_95 = arith.constant 0 : index
    %c0_96 = arith.constant 0 : index
    %114 = vector.load %arg3[%c0_92, %c0_93, %c0_94, %c0_95, %c0_96] : memref<1x8x2x8x32xf32, #tpu.memory_space<vmem>>, vector<1x8x1x8x32xf32>
    %115 = vector.shape_cast %114 : vector<1x8x1x8x32xf32> to vector<8x8x32xf32>
    %116 = vector.broadcast %110 : vector<1x16xf32> to vector<64x16xf32>
    %117 = arith.mulf %16, %116 : vector<64x16xf32>
    %118 = vector.broadcast %113 : vector<1x16xf32> to vector<64x16xf32>
    %119 = arith.addf %117, %118 : vector<64x16xf32>
    %120 = vector.shape_cast %119 : vector<64x16xf32> to vector<8x8x16xf32>
    %121 = vector.extract_strided_slice %115 {offsets = [0, 0, 0], sizes = [8, 8, 16], strides = [1, 1, 1]} : vector<8x8x32xf32> to vector<8x8x16xf32>
    %122 = vector.broadcast %110 : vector<1x16xf32> to vector<64x16xf32>
    %123 = arith.mulf %35, %122 : vector<64x16xf32>
    %124 = vector.broadcast %113 : vector<1x16xf32> to vector<64x16xf32>
    %125 = arith.addf %123, %124 : vector<64x16xf32>
    %126 = vector.shape_cast %125 : vector<64x16xf32> to vector<8x8x16xf32>
    %127 = vector.extract_strided_slice %115 {offsets = [0, 0, 16], sizes = [8, 8, 16], strides = [1, 1, 1]} : vector<8x8x32xf32> to vector<8x8x16xf32>
    %128 = tpu.concatenate %120, %121, %126, %127 in 2 : vector<8x8x16xf32>, vector<8x8x16xf32>, vector<8x8x16xf32>, vector<8x8x16xf32> -> vector<8x8x64xf32>
    %c0_97 = arith.constant 0 : index
    %c0_98 = arith.constant 0 : index
    %c0_99 = arith.constant 0 : index
    %c0_100 = arith.constant 0 : index
    %c0_101 = arith.constant 0 : index
    %129 = vector.load %arg6[%c0_97, %c0_98, %c0_99, %c0_100, %c0_101] : memref<1x8x2x8x64xf32, #tpu.memory_space<vmem>>, vector<1x8x1x8x64xf32>
    %130 = vector.shape_cast %129 : vector<1x8x1x8x64xf32> to vector<8x8x64xf32>
    %131 = vector.shape_cast %128 : vector<8x8x64xf32> to vector<1x8x1x8x64xf32>
    tpu.vector_store %arg6[%c0_97, %c0_98, %c0_99, %c0_100, %c0_101], %131 {strides = array<i32>} : memref<1x8x2x8x64xf32, #tpu.memory_space<vmem>>, vector<1x8x1x8x64xf32>,
    %c0_102 = arith.constant 0 : index
    %c0_103 = arith.constant 0 : index
    %c1_104 = arith.constant 1 : index
    %c0_105 = arith.constant 0 : index
    %c0_106 = arith.constant 0 : index
    %132 = vector.load %arg3[%c0_102, %c0_103, %c1_104, %c0_105, %c0_106] : memref<1x8x2x8x32xf32, #tpu.memory_space<vmem>>, vector<1x8x1x8x32xf32>
    %133 = vector.shape_cast %132 : vector<1x8x1x8x32xf32> to vector<8x8x32xf32>
    %134 = vector.broadcast %110 : vector<1x16xf32> to vector<64x16xf32>
    %135 = arith.mulf %54, %134 : vector<64x16xf32>
    %136 = vector.broadcast %113 : vector<1x16xf32> to vector<64x16xf32>
    %137 = arith.addf %135, %136 : vector<64x16xf32>
    %138 = vector.shape_cast %137 : vector<64x16xf32> to vector<8x8x16xf32>
    %139 = vector.extract_strided_slice %133 {offsets = [0, 0, 0], sizes = [8, 8, 16], strides = [1, 1, 1]} : vector<8x8x32xf32> to vector<8x8x16xf32>
    %140 = vector.broadcast %110 : vector<1x16xf32> to vector<64x16xf32>
    %141 = arith.mulf %73, %140 : vector<64x16xf32>
    %142 = vector.broadcast %113 : vector<1x16xf32> to vector<64x16xf32>
    %143 = arith.addf %141, %142 : vector<64x16xf32>
    %144 = vector.shape_cast %143 : vector<64x16xf32> to vector<8x8x16xf32>
    %145 = vector.extract_strided_slice %133 {offsets = [0, 0, 16], sizes = [8, 8, 16], strides = [1, 1, 1]} : vector<8x8x32xf32> to vector<8x8x16xf32>
    %146 = tpu.concatenate %138, %139, %144, %145 in 2 : vector<8x8x16xf32>, vector<8x8x16xf32>, vector<8x8x16xf32>, vector<8x8x16xf32> -> vector<8x8x64xf32>
    %c0_107 = arith.constant 0 : index
    %c0_108 = arith.constant 0 : index
    %c1_109 = arith.constant 1 : index
    %c0_110 = arith.constant 0 : index
    %c0_111 = arith.constant 0 : index
    %147 = vector.load %arg6[%c0_107, %c0_108, %c1_109, %c0_110, %c0_111] : memref<1x8x2x8x64xf32, #tpu.memory_space<vmem>>, vector<1x8x1x8x64xf32>
    %148 = vector.shape_cast %147 : vector<1x8x1x8x64xf32> to vector<8x8x64xf32>
    %149 = vector.shape_cast %146 : vector<8x8x64xf32> to vector<1x8x1x8x64xf32>
    tpu.vector_store %arg6[%c0_107, %c0_108, %c1_109, %c0_110, %c0_111], %149 {strides = array<i32>} : memref<1x8x2x8x64xf32, #tpu.memory_space<vmem>>, vector<1x8x1x8x64xf32>,
    return
  }
  func.func @transform_0(%arg0: i32) -> (i32, i32, i32, i32) {
    %c0_i32 = arith.constant 0 : i32
    %c0_i32_0 = arith.constant 0 : i32
    %c0_i32_1 = arith.constant 0 : i32
    %c0_i32_2 = arith.constant 0 : i32
    return %arg0, %c0_i32, %c0_i32_0, %c0_i32_1 : i32, i32, i32, i32
  }
  func.func @transform_1(%arg0: i32) -> (i32, i32, i32) {
    %c0_i32 = arith.constant 0 : i32
    %c0_i32_0 = arith.constant 0 : i32
    %c0_i32_1 = arith.constant 0 : i32
    %c0_i32_2 = arith.constant 0 : i32
    return %c0_i32, %c0_i32_0, %c0_i32_1 : i32, i32, i32
  }
  func.func @transform_2(%arg0: i32) -> (i32, i32, i32, i32, i32) {
    %c0_i32 = arith.constant 0 : i32
    %c0_i32_0 = arith.constant 0 : i32
    %c0_i32_1 = arith.constant 0 : i32
    %c0_i32_2 = arith.constant 0 : i32
    %c0_i32_3 = arith.constant 0 : i32
    return %arg0, %c0_i32, %c0_i32_0, %c0_i32_1, %c0_i32_2 : i32, i32, i32, i32, i32
  }
  func.func @transform_3(%arg0: i32) -> (i32, i32) {
    %c0_i32 = arith.constant 0 : i32
    %c0_i32_0 = arith.constant 0 : i32
    %c0_i32_1 = arith.constant 0 : i32
    return %c0_i32, %c0_i32_0 : i32, i32
  }
  func.func @transform_4(%arg0: i32) -> (i32, i32) {
    %c0_i32 = arith.constant 0 : i32
    %c0_i32_0 = arith.constant 0 : i32
    %c0_i32_1 = arith.constant 0 : i32
    return %c0_i32, %c0_i32_0 : i32, i32
  }
  func.func @transform_5(%arg0: i32) -> (i32, i32, i32, i32, i32) {
    %c0_i32 = arith.constant 0 : i32
    %c0_i32_0 = arith.constant 0 : i32
    %c0_i32_1 = arith.constant 0 : i32
    %c0_i32_2 = arith.constant 0 : i32
    %c0_i32_3 = arith.constant 0 : i32
    return %arg0, %c0_i32, %c0_i32_0, %c0_i32_1, %c0_i32_2 : i32, i32, i32, i32, i32
  }
}

</mosaic_0001>

<llo_original>
// kernel: unet_up_forward.1
$region0: #{unet_up_forward.1}
  #allocation0 [shape = 'u32[]', space=smem, size = 0x4, offset = 0x4, fixed_abs, tag = 'smem constant byte address 0x4 - core index']
  #allocation1 [shape = 'u32[144,128]{1,0:T(1,128)}', space=vmem, size = 0x12000, scoped, tag = 'internal scratch']
  %s0 = inlined_call_operand.vmem [shape: bf16[2,10,10,32], index: 0, kind: input, shape index: {}]
  %s1 = inlined_call_operand.vmem [shape: bf16[4,128,16], index: 1, kind: input, shape index: {}]
  %s2 = inlined_call_operand.vmem [shape: f32[2,8,2,8,32], index: 2, kind: input, shape index: {}]
  %s3 = inlined_call_operand.vmem [shape: f32[1,16], index: 3, kind: input, shape index: {}]
  %s4 = inlined_call_operand.vmem [shape: f32[1,16], index: 4, kind: input, shape index: {}]
  %s5 = inlined_call_operand.vmem [shape: f32[2,8,2,8,64], index: 5, kind: output, shape index: {}]
  %s6 = sld [smem:[#allocation0]]
  $region53: #{unet_up_forward.1} parent=0
    _
  %s8 = ssub.s32 1, %s6
  %s9 = scalar_select 0, %s8, %s6
  loop: start=0, step=1, limit=4
  $region2: #{unet_up_forward.1} parent=0 // loop_pre_header
    _
  $region3: #{unet_up_forward.1} parent=0 // loop_header
    %s11 = sphi 0, %s15
    %p12 = scmp.ge.s32.totalorder %s11, 4
    %s21 = sphi 0, %s23
    %s24 = sphi 0, %s21
    %s25 = sphi 0, %s24
    %s41 = sphi 0, %s25
    %s45 = sphi 0, %s45
    %s47 = sphi 0, %s45
    %s48 = sphi 0, %s47
    %s62 = sphi 0, %s48
    %s68 = sphi 0, %s70
    %s71 = sphi 0, %s68
    %s72 = sphi 0, %s71
    %s88 = sphi 0, %s72
    %s92 = sphi 0, %s92
    %s94 = sphi 0, %s92
    %s95 = sphi 0, %s94
    %s109 = sphi 0, %s95
    %s113 = sphi 0, %s113
    %s115 = sphi 0, %s113
    %s116 = sphi 0, %s115
    %s130 = sphi 0, %s116
    %s136 = sphi 0, %s138
    %s139 = sphi 0, %s136
    %s140 = sphi 0, %s139
    %s156 = sphi 0, %s140
  $region4: #{unet_up_forward.1} parent=0 // loop_header_branch
    %14 = sbr.rel (%p12) target = $region8
  $region5: #{unet_up_forward.1} parent=0 // loop_body
    %s16 = ssub.s32 %s11, 1
    %s17 = ssub.s32 %s11, 2
    %s18 = sadd.s32 %s11, 1
    %s19 = ssub.s32 %s11, %s18
    %p20 = scmp.eq.s32.totalorder %s19, 0
    %s22 = sadd.s32 %s21, 1
    %s23 = scalar_select %p20, %s21, %s22
    %p26 = pneg %p20
    %p27 = scmp.eq.s32.totalorder %s11, 1
    %p28 = por %p26, %p27
    %p29 = scmp.ne.s32.totalorder %s21, %s24
    %p30 = scmp.eq.s32.totalorder %s11, 0
    %p31 = por %p29, %p30
    %p32 = scmp.ne.s32.totalorder %s21, %s24
    %p33 = scmp.eq.s32.totalorder %s16, 1
    %p34 = por %p32, %p33
    %p35 = scmp.ne.s32.totalorder %s24, %s25
    %p36 = scmp.eq.s32.totalorder %s16, 0
    %p37 = por %p35, %p36
    %p38 = scmp.ne.s32.totalorder %s24, %s25
    %p39 = scmp.eq.s32.totalorder %s17, 1
    %p40 = por %p38, %p39
    %p42 = scmp.ne.s32.totalorder %s25, %s41
    %p43 = scmp.eq.s32.totalorder %s17, 0
    %p44 = por %p42, %p43
    %s46 = sadd.s32 %s45, 1
    %p49 = scmp.eq.s32.totalorder %s11, 1
    %p50 = scmp.ne.s32.totalorder %s45, %s47
    %p51 = scmp.eq.s32.totalorder %s11, 0
    %p52 = por %p50, %p51
    %p53 = scmp.ne.s32.totalorder %s45, %s47
    %p54 = scmp.eq.s32.totalorder %s16, 1
    %p55 = por %p53, %p54
    %p56 = scmp.ne.s32.totalorder %s47, %s48
    %p57 = scmp.eq.s32.totalorder %s16, 0
    %p58 = por %p56, %p57
    %p59 = scmp.ne.s32.totalorder %s47, %s48
    %p60 = scmp.eq.s32.totalorder %s17, 1
    %p61 = por %p59, %p60
    %p63 = scmp.ne.s32.totalorder %s48, %s62
    %p64 = scmp.eq.s32.totalorder %s17, 0
    %p65 = por %p63, %p64
    %s66 = ssub.s32 %s11, %s18
    %p67 = scmp.eq.s32.totalorder %s66, 0
    %s69 = sadd.s32 %s68, 1
    %s70 = scalar_select %p67, %s68, %s69
    %p73 = pneg %p67
    %p74 = scmp.eq.s32.totalorder %s11, 1
    %p75 = por %p73, %p74
    %p76 = scmp.ne.s32.totalorder %s68, %s71
    %p77 = scmp.eq.s32.totalorder %s11, 0
    %p78 = por %p76, %p77
    %p79 = scmp.ne.s32.totalorder %s68, %s71
    %p80 = scmp.eq.s32.totalorder %s16, 1
    %p81 = por %p79, %p80
    %p82 = scmp.ne.s32.totalorder %s71, %s72
    %p83 = scmp.eq.s32.totalorder %s16, 0
    %p84 = por %p82, %p83
    %p85 = scmp.ne.s32.totalorder %s71, %s72
    %p86 = scmp.eq.s32.totalorder %s17, 1
    %p87 = por %p85, %p86
    %p89 = scmp.ne.s32.totalorder %s72, %s88
    %p90 = scmp.eq.s32.totalorder %s17, 0
    %p91 = por %p89, %p90
    %s93 = sadd.s32 %s92, 1
    %p96 = scmp.eq.s32.totalorder %s11, 1
    %p97 = scmp.ne.s32.totalorder %s92, %s94
    %p98 = scmp.eq.s32.totalorder %s11, 0
    %p99 = por %p97, %p98
    %p100 = scmp.ne.s32.totalorder %s92, %s94
    %p101 = scmp.eq.s32.totalorder %s16, 1
    %p102 = por %p100, %p101
    %p103 = scmp.ne.s32.totalorder %s94, %s95
    %p104 = scmp.eq.s32.totalorder %s16, 0
    %p105 = por %p103, %p104
    %p106 = scmp.ne.s32.totalorder %s94, %s95
    %p107 = scmp.eq.s32.totalorder %s17, 1
    %p108 = por %p106, %p107
    %p110 = scmp.ne.s32.totalorder %s95, %s109
    %p111 = scmp.eq.s32.totalorder %s17, 0
    %p112 = por %p110, %p111
    %s114 = sadd.s32 %s113, 1
    %p117 = scmp.eq.s32.totalorder %s11, 1
    %p118 = scmp.ne.s32.totalorder %s113, %s115
    %p119 = scmp.eq.s32.totalorder %s11, 0
    %p120 = por %p118, %p119
    %p121 = scmp.ne.s32.totalorder %s113, %s115
    %p122 = scmp.eq.s32.totalorder %s16, 1
    %p123 = por %p121, %p122
    %p124 = scmp.ne.s32.totalorder %s115, %s116
    %p125 = scmp.eq.s32.totalorder %s16, 0
    %p126 = por %p124, %p125
    %p127 = scmp.ne.s32.totalorder %s115, %s116
    %p128 = scmp.eq.s32.totalorder %s17, 1
    %p129 = por %p127, %p128
    %p131 = scmp.ne.s32.totalorder %s116, %s130
    %p132 = scmp.eq.s32.totalorder %s17, 0
    %p133 = por %p131, %p132
    %s134 = ssub.s32 %s11, %s18
    %p135 = scmp.eq.s32.totalorder %s134, 0
    %s137 = sadd.s32 %s136, 1
    %s138 = scalar_select %p135, %s136, %s137
    %p141 = pneg %p135
    %p142 = scmp.eq.s32.totalorder %s11, 1
    %p143 = por %p141, %p142
    %p144 = scmp.ne.s32.totalorder %s136, %s139
    %p145 = scmp.eq.s32.totalorder %s11, 0
    %p146 = por %p144, %p145
    %p147 = scmp.ne.s32.totalorder %s136, %s139
    %p148 = scmp.eq.s32.totalorder %s16, 1
    %p149 = por %p147, %p148
    %p150 = scmp.ne.s32.totalorder %s139, %s140
    %p151 = scmp.eq.s32.totalorder %s16, 0
    %p152 = por %p150, %p151
    %p153 = scmp.ne.s32.totalorder %s139, %s140
    %p154 = scmp.eq.s32.totalorder %s17, 1
    %p155 = por %p153, %p154
    %p157 = scmp.ne.s32.totalorder %s140, %s156
    %p158 = scmp.eq.s32.totalorder %s17, 0
    %p159 = por %p157, %p158
    %p160 = scmp.le.s32.totalorder 1, %s11
    %p161 = scmp.lt.s32.totalorder %s11, 3
    %p162 = pnand %p160, %p161
    %p163 = pneg %p162
    // Predicated region
    $region9: #{unet_up_forward.1} parent=5 // pred_check
      _
    $region10: #{unet_up_forward.1} parent=5 // pred_check_branch
      %165 = sbr.rel (%p162) target = $region12
    $region11: #{unet_up_forward.1} parent=5 // pred_region
      %s166 = ssub.s32 %s11, 1
      // Predicated region
      $region13: #{unet_up_forward.1} parent=11 // pred_check
        %p167 = pneg %p58
      $region14: #{unet_up_forward.1} parent=11 // pred_check_branch
        %169 = sbr.rel (%p167) target = $region16
      $region15: #{unet_up_forward.1} parent=11 // pred_region
        _
      $region16: #{unet_up_forward.1} parent=11 // pred_fallthru
        _
      // Predicated region
      $region17: #{unet_up_forward.1} parent=11 // pred_check
        %p170 = pneg %p105
      $region18: #{unet_up_forward.1} parent=11 // pred_check_branch
        %172 = sbr.rel (%p170) target = $region20
      $region19: #{unet_up_forward.1} parent=11 // pred_region
        _
      $region20: #{unet_up_forward.1} parent=11 // pred_fallthru
        _
      // Predicated region
      $region21: #{unet_up_forward.1} parent=11 // pred_check
        %p173 = pneg %p126
      $region22: #{unet_up_forward.1} parent=11 // pred_check_branch
        %175 = sbr.rel (%p173) target = $region24
      $region23: #{unet_up_forward.1} parent=11 // pred_region
        _
      $region24: #{unet_up_forward.1} parent=11 // pred_fallthru
        _
    $region12: #{unet_up_forward.1} parent=5 // pred_fallthru
      _
    %p176 = scmp.lt.s32.totalorder %s11, 2
    // Predicated region
    $region25: #{unet_up_forward.1} parent=5 // pred_check
      %p177 = pneg %p176
    $region26: #{unet_up_forward.1} parent=5 // pred_check_branch
      %179 = sbr.rel (%p177) target = $region28
    $region27: #{unet_up_forward.1} parent=5 // pred_region
      // Predicated region
      $region29: #{unet_up_forward.1} parent=27 // pred_check
        %p180 = pneg %p31
      $region30: #{unet_up_forward.1} parent=27 // pred_check_branch
        %182 = sbr.rel (%p180) target = $region32
      $region31: #{unet_up_forward.1} parent=27 // pred_region
        %p183 = scmp.lt.s32.totalorder %s11, 1
        %s184 = scalar_select %p183, %s11, 1
        %s185 = smul.addr %s184, 20
        %s186 = smul.addr %s185, 4
        %s187 = scalar_lea.vmem %s0, %s186
      $region32: #{unet_up_forward.1} parent=27 // pred_fallthru
        _
      // Predicated region
      $region33: #{unet_up_forward.1} parent=27 // pred_check
        %p188 = pneg %p78
      $region34: #{unet_up_forward.1} parent=27 // pred_check_branch
        %190 = sbr.rel (%p188) target = $region36
      $region35: #{unet_up_forward.1} parent=27 // pred_region
        %p191 = scmp.lt.s32.totalorder %s11, 1
        %s192 = scalar_select %p191, %s11, 1
        %s193 = smul.addr %s192, 16
        %s194 = smul.addr %s193, 8
        %s195 = scalar_lea.vmem %s2, %s194
      $region36: #{unet_up_forward.1} parent=27 // pred_fallthru
        _
    $region28: #{unet_up_forward.1} parent=5 // pred_fallthru
      _
    %p196 = scmp.le.s32.totalorder 1, %s11
    %p197 = scmp.lt.s32.totalorder %s11, 3
    %p198 = pnand %p196, %p197
    %p199 = pneg %p198
    // Predicated region
    $region37: #{unet_up_forward.1} parent=5 // pred_check
      _
    $region38: #{unet_up_forward.1} parent=5 // pred_check_branch
      %201 = sbr.rel (%p198) target = $region40
    $region39: #{unet_up_forward.1} parent=5 // pred_region
      %s202 = ssub.s32 %s11, 1
      %p203 = scmp.lt.s32.totalorder %s16, 1
      %s204 = scalar_select %p203, %s16, 1
      %s205 = smul.addr %s204, 20
      %s206 = smul.addr %s205, 4
      %s207 = scalar_lea.vmem %s0, %s206
      %p208 = pneg %p37
      %p209 = pneg %p34
      %p210 = pneg %p58
      %p211 = pneg %p55
      %p212 = scmp.lt.s32.totalorder %s16, 1
      %s213 = scalar_select %p212, %s16, 1
      %s214 = smul.addr %s213, 16
      %s215 = smul.addr %s214, 8
      %s216 = scalar_lea.vmem %s2, %s215
      %p217 = pneg %p84
      %p218 = pneg %p81
      %p219 = pneg %p105
      %p220 = pneg %p102
      %p221 = pneg %p126
      %p222 = pneg %p123
      %p223 = pneg %p152
      %p224 = pneg %p149
      %p225 = scmp.lt.s32.totalorder %s16, 1
      %s226 = scalar_select %p225, %s16, 1
      %s227 = smul.addr %s226, 16
      %s228 = smul.addr %s227, 8
      %s229 = scalar_lea.vmem %s5, %s228
      %p230 = scmp.lt.s32.totalorder %s16, 1
      %s231 = scalar_select %p230, %s16, 1
      %s232 = smul.addr %s231, 20
      %s233 = smul.addr %s232, 4
      %s234 = scalar_lea.vmem %s0, %s233
      %p235 = scmp.lt.s32.totalorder %s16, 1
      %s236 = scalar_select %p235, %s16, 1
      %s237 = smul.addr %s236, 16
      %s238 = smul.addr %s237, 8
      %s239 = scalar_lea.vmem %s2, %s238
      %p240 = scmp.lt.s32.totalorder %s16, 1
      %s241 = scalar_select %p240, %s16, 1
      %s242 = smul.addr %s241, 16
      %s243 = smul.addr %s242, 8
      %s244 = scalar_lea.vmem %s5, %s243
      %v246 = vld [vmem:[%s234] sm:$0xf]
      %v247 = vld [vmem:[%s234 + $0x8] sm:$0xf]
      %v248 = vld [vmem:[%s234 + $0x10] sm:$0xf]
      %v249 = vld [vmem:[%s234 + $0x18] sm:$0xf]
      %v250 = vld [vmem:[%s234 + $0x20] sm:$0xf]
      %v251 = vld [vmem:[%s234 + $0x28] sm:$0xf]
      %v252 = vld [vmem:[%s234 + $0x30] sm:$0xf]
      %v253 = vld [vmem:[%s234 + $0x38] sm:$0xf]
      %v254 = vld [vmem:[%s234 + $0x4] sm:$0x1]
      %v255 = vld [vmem:[%s234 + $0xc] sm:$0x1]
      %v256 = vld [vmem:[%s234 + $0x14] sm:$0x1]
      %v257 = vld [vmem:[%s234 + $0x1c] sm:$0x1]
      %v258 = vld [vmem:[%s234 + $0x24] sm:$0x1]
      %v259 = vld [vmem:[%s234 + $0x2c] sm:$0x1]
      %v260 = vld [vmem:[%s234 + $0x34] sm:$0x1]
      %v261 = vld [vmem:[%s234 + $0x3c] sm:$0x1]
      %vm262 = vsmask.f32 3328
      %vm263 = vsmask.f32 7440
      %vm264 = vmor %vm262, %vm263
      %v266 = vshrl.u32 %v246, 16
      %v268 = vrot.slane %v266, 4
      %v269 = vshll.u32 %v246, 16
      %v271 = vrot.slane %v269, 5
      %v272 = vor.u32 %v268, %v271
      %v273 = vrot.slane %v272, 4
      %v275 = vshll.u32 %v254, 16
      %v277 = vrot.slane %v275, 5
      %v278 = vsel %vm264, %v273, %v277
      %v280 = vshrl.u32 %v247, 16
      %v282 = vrot.slane %v280, 4
      %v283 = vshll.u32 %v247, 16
      %v285 = vrot.slane %v283, 5
      %v286 = vor.u32 %v282, %v285
      %v287 = vrot.slane %v286, 4
      %v289 = vshll.u32 %v255, 16
      %v291 = vrot.slane %v289, 5
      %v292 = vsel %vm264, %v287, %v291
      %v294 = vshrl.u32 %v248, 16
      %v296 = vrot.slane %v294, 4
      %v297 = vshll.u32 %v248, 16
      %v299 = vrot.slane %v297, 5
      %v300 = vor.u32 %v296, %v299
      %v301 = vrot.slane %v300, 4
      %v303 = vshll.u32 %v256, 16
      %v305 = vrot.slane %v303, 5
      %v306 = vsel %vm264, %v301, %v305
      %v308 = vshrl.u32 %v249, 16
      %v310 = vrot.slane %v308, 4
      %v311 = vshll.u32 %v249, 16
      %v313 = vrot.slane %v311, 5
      %v314 = vor.u32 %v310, %v313
      %v315 = vrot.slane %v314, 4
      %v317 = vshll.u32 %v257, 16
      %v319 = vrot.slane %v317, 5
      %v320 = vsel %vm264, %v315, %v319
      %v322 = vshrl.u32 %v250, 16
      %v324 = vrot.slane %v322, 4
      %v325 = vshll.u32 %v250, 16
      %v327 = vrot.slane %v325, 5
      %v328 = vor.u32 %v324, %v327
      %v329 = vrot.slane %v328, 4
      %v331 = vshll.u32 %v258, 16
      %v333 = vrot.slane %v331, 5
      %v334 = vsel %vm264, %v329, %v333
      %v336 = vshrl.u32 %v251, 16
      %v338 = vrot.slane %v336, 4
      %v339 = vshll.u32 %v251, 16
      %v341 = vrot.slane %v339, 5
      %v342 = vor.u32 %v338, %v341
      %v343 = vrot.slane %v342, 4
      %v345 = vshll.u32 %v259, 16
      %v347 = vrot.slane %v345, 5
      %v348 = vsel %vm264, %v343, %v347
      %v350 = vshrl.u32 %v252, 16
      %v352 = vrot.slane %v350, 4
      %v353 = vshll.u32 %v252, 16
      %v355 = vrot.slane %v353, 5
      %v356 = vor.u32 %v352, %v355
      %v357 = vrot.slane %v356, 4
      %v359 = vshll.u32 %v260, 16
      %v361 = vrot.slane %v359, 5
      %v362 = vsel %vm264, %v357, %v361
      %v364 = vshrl.u32 %v253, 16
      %v366 = vrot.slane %v364, 4
      %v367 = vshll.u32 %v253, 16
      %v369 = vrot.slane %v367, 5
      %v370 = vor.u32 %v366, %v369
      %v371 = vrot.slane %v370, 4
      %v373 = vshll.u32 %v261, 16
      %v375 = vrot.slane %v373, 5
      %v376 = vsel %vm264, %v371, %v375
      %s377 = scalar_lea.vmem %s234, 8
      %v378 = vld [vmem:[%s377] sm:$0xf]
      %v379 = vld [vmem:[%s377 + $0x8] sm:$0xf]
      %v380 = vld [vmem:[%s377 + $0x10] sm:$0xf]
      %v381 = vld [vmem:[%s377 + $0x18] sm:$0xf]
      %v382 = vld [vmem:[%s377 + $0x20] sm:$0xf]
      %v383 = vld [vmem:[%s377 + $0x28] sm:$0xf]
      %v384 = vld [vmem:[%s377 + $0x30] sm:$0xf]
      %v385 = vld [vmem:[%s377 + $0x38] sm:$0xf]
      %v386 = vld [vmem:[%s377 + $0x4] sm:$0x1]
      %v387 = vld [vmem:[%s377 + $0xc] sm:$0x1]
      %v388 = vld [vmem:[%s377 + $0x14] sm:$0x1]
      %v389 = vld [vmem:[%s377 + $0x1c] sm:$0x1]
      %v390 = vld [vmem:[%s377 + $0x24] sm:$0x1]
      %v391 = vld [vmem:[%s377 + $0x2c] sm:$0x1]
      %v392 = vld [vmem:[%s377 + $0x34] sm:$0x1]
      %v393 = vld [vmem:[%s377 + $0x3c] sm:$0x1]
      %v395 = vshrl.u32 %v378, 16
      %v397 = vrot.slane %v395, 4
      %v398 = vshll.u32 %v378, 16
      %v400 = vrot.slane %v398, 5
      %v401 = vor.u32 %v397, %v400
      %v402 = vrot.slane %v401, 4
      %v404 = vshll.u32 %v386, 16
      %v406 = vrot.slane %v404, 5
      %v407 = vsel %vm264, %v402, %v406
      %v409 = vshrl.u32 %v379, 16
      %v411 = vrot.slane %v409, 4
      %v412 = vshll.u32 %v379, 16
      %v414 = vrot.slane %v412, 5
      %v415 = vor.u32 %v411, %v414
      %v416 = vrot.slane %v415, 4
      %v418 = vshll.u32 %v387, 16
      %v420 = vrot.slane %v418, 5
      %v421 = vsel %vm264, %v416, %v420
      %v423 = vshrl.u32 %v380, 16
      %v425 = vrot.slane %v423, 4
      %v426 = vshll.u32 %v380, 16
      %v428 = vrot.slane %v426, 5
      %v429 = vor.u32 %v425, %v428
      %v430 = vrot.slane %v429, 4
      %v432 = vshll.u32 %v388, 16
      %v434 = vrot.slane %v432, 5
      %v435 = vsel %vm264, %v430, %v434
      %v437 = vshrl.u32 %v381, 16
      %v439 = vrot.slane %v437, 4
      %v440 = vshll.u32 %v381, 16
      %v442 = vrot.slane %v440, 5
      %v443 = vor.u32 %v439, %v442
      %v444 = vrot.slane %v443, 4
      %v446 = vshll.u32 %v389, 16
      %v448 = vrot.slane %v446, 5
      %v449 = vsel %vm264, %v444, %v448
      %v451 = vshrl.u32 %v382, 16
      %v453 = vrot.slane %v451, 4
      %v454 = vshll.u32 %v382, 16
      %v456 = vrot.slane %v454, 5
      %v457 = vor.u32 %v453, %v456
      %v458 = vrot.slane %v457, 4
      %v460 = vshll.u32 %v390, 16
      %v462 = vrot.slane %v460, 5
      %v463 = vsel %vm264, %v458, %v462
      %v465 = vshrl.u32 %v383, 16
      %v467 = vrot.slane %v465, 4
      %v468 = vshll.u32 %v383, 16
      %v470 = vrot.slane %v468, 5
      %v471 = vor.u32 %v467, %v470
      %v472 = vrot.slane %v471, 4
      %v474 = vshll.u32 %v391, 16
      %v476 = vrot.slane %v474, 5
      %v477 = vsel %vm264, %v472, %v476
      %v479 = vshrl.u32 %v384, 16
      %v481 = vrot.slane %v479, 4
      %v482 = vshll.u32 %v384, 16
      %v484 = vrot.slane %v482, 5
      %v485 = vor.u32 %v481, %v484
      %v486 = vrot.slane %v485, 4
      %v488 = vshll.u32 %v392, 16
      %v490 = vrot.slane %v488, 5
      %v491 = vsel %vm264, %v486, %v490
      %v493 = vshrl.u32 %v385, 16
      %v495 = vrot.slane %v493, 4
      %v496 = vshll.u32 %v385, 16
      %v498 = vrot.slane %v496, 5
      %v499 = vor.u32 %v495, %v498
      %v500 = vrot.slane %v499, 4
      %v502 = vshll.u32 %v393, 16
      %v504 = vrot.slane %v502, 5
      %v505 = vsel %vm264, %v500, %v504
      %v514 = vunpack.c.l.b16 %v246
      %v515 = vunpack.c.l.b16 %v247
      %v516 = vunpack.c.l.b16 %v248
      %v517 = vunpack.c.l.b16 %v249
      %v518 = vunpack.c.l.b16 %v250
      %v519 = vunpack.c.l.b16 %v251
      %v520 = vunpack.c.l.b16 %v252
      %v521 = vunpack.c.l.b16 %v253
      %v522 = vpack.c.b16 %v515, %v514
      %v523 = vpack.c.b16 %v517, %v516
      %v524 = vpack.c.b16 %v519, %v518
      %v525 = vpack.c.b16 %v521, %v520
      %v526 = vunpack.c.l.b16 %v278
      %v527 = vunpack.c.l.b16 %v292
      %v528 = vunpack.c.l.b16 %v306
      %v529 = vunpack.c.l.b16 %v320
      %v530 = vunpack.c.l.b16 %v334
      %v531 = vunpack.c.l.b16 %v348
      %v532 = vunpack.c.l.b16 %v362
      %v533 = vunpack.c.l.b16 %v376
      %v534 = vpack.c.b16 %v527, %v526
      %v535 = vpack.c.b16 %v529, %v528
      %v536 = vpack.c.b16 %v531, %v530
      %v537 = vpack.c.b16 %v533, %v532
      %538 = vrot.lane.b32.xlu0 %v534, 32
      %v539 = vpop.permute.xlu0 %538
      %540 = vrot.lane.b32.xlu0 %v535, 32
      %v541 = vpop.permute.xlu0 %540
      %542 = vrot.lane.b32.xlu0 %v536, 32
      %v543 = vpop.permute.xlu0 %542
      %544 = vrot.lane.b32.xlu0 %v537, 32
      %v545 = vpop.permute.xlu0 %544
      %v554 = vunpack.c.l.b16 %v378
      %v555 = vunpack.c.l.b16 %v379
      %v556 = vunpack.c.l.b16 %v380
      %v557 = vunpack.c.l.b16 %v381
      %v558 = vunpack.c.l.b16 %v382
      %v559 = vunpack.c.l.b16 %v383
      %v560 = vunpack.c.l.b16 %v384
      %v561 = vunpack.c.l.b16 %v385
      %v562 = vpack.c.b16 %v555, %v554
      %v563 = vpack.c.b16 %v557, %v556
      %v564 = vpack.c.b16 %v559, %v558
      %v565 = vpack.c.b16 %v561, %v560
      %566 = vrot.lane.b32.xlu0 %v562, 64
      %v567 = vpop.permute.xlu0 %566
      %568 = vrot.lane.b32.xlu0 %v563, 64
      %v569 = vpop.permute.xlu0 %568
      %570 = vrot.lane.b32.xlu0 %v564, 64
      %v571 = vpop.permute.xlu0 %570
      %572 = vrot.lane.b32.xlu0 %v565, 64
      %v573 = vpop.permute.xlu0 %572
      %v574 = vunpack.c.l.b16 %v407
      %v575 = vunpack.c.l.b16 %v421
      %v576 = vunpack.c.l.b16 %v435
      %v577 = vunpack.c.l.b16 %v449
      %v578 = vunpack.c.l.b16 %v463
      %v579 = vunpack.c.l.b16 %v477
      %v580 = vunpack.c.l.b16 %v491
      %v581 = vunpack.c.l.b16 %v505
      %v582 = vpack.c.b16 %v575, %v574
      %v583 = vpack.c.b16 %v577, %v576
      %v584 = vpack.c.b16 %v579, %v578
      %v585 = vpack.c.b16 %v581, %v580
      %586 = vrot.lane.b32.xlu0 %v582, 96
      %v587 = vpop.permute.xlu0 %586
      %588 = vrot.lane.b32.xlu0 %v583, 96
      %v589 = vpop.permute.xlu0 %588
      %590 = vrot.lane.b32.xlu0 %v584, 96
      %v591 = vpop.permute.xlu0 %590
      %592 = vrot.lane.b32.xlu0 %v585, 96
      %v593 = vpop.permute.xlu0 %592
      %vm594 = vcmask 261120
      %v597 = vsel %vm594, %v522, %v539
      %v600 = vsel %vm594, %v523, %v541
      %v603 = vsel %vm594, %v524, %v543
      %v606 = vsel %vm594, %v525, %v545
      %vm607 = vcmask 523264
      %v609 = vsel %vm607, %v597, %v567
      %v611 = vsel %vm607, %v600, %v569
      %v613 = vsel %vm607, %v603, %v571
      %v615 = vsel %vm607, %v606, %v573
      %vm616 = vcmask 785408
      %v618 = vsel %vm616, %v609, %v587
      %v621 = vsel %vm616, %v611, %v589
      %v624 = vsel %vm616, %v613, %v591
      %v627 = vsel %vm616, %v615, %v593
      %v629 = vld [vmem:[%s1] sm:$0xf]
      %v630 = vld [vmem:[%s1 + $0x4] sm:$0xf]
      %v631 = vld [vmem:[%s1 + $0x8] sm:$0xf]
      %v632 = vld [vmem:[%s1 + $0xc] sm:$0xf]
      %v633 = vld [vmem:[%s1 + $0x10] sm:$0xf]
      %v634 = vld [vmem:[%s1 + $0x14] sm:$0xf]
      %v635 = vld [vmem:[%s1 + $0x18] sm:$0xf]
      %v636 = vld [vmem:[%s1 + $0x1c] sm:$0xf]
      %v637 = vld [vmem:[%s1 + $0x20] sm:$0xf]
      %v638 = vld [vmem:[%s1 + $0x24] sm:$0xf]
      %v639 = vld [vmem:[%s1 + $0x28] sm:$0xf]
      %v640 = vld [vmem:[%s1 + $0x2c] sm:$0xf]
      %v641 = vld [vmem:[%s1 + $0x30] sm:$0xf]
      %v642 = vld [vmem:[%s1 + $0x34] sm:$0xf]
      %v643 = vld [vmem:[%s1 + $0x38] sm:$0xf]
      %v644 = vld [vmem:[%s1 + $0x3c] sm:$0xf]
      %v661 = vunpack.c.l.b16 %v629
      %v662 = vunpack.c.l.b16 %v630
      %v663 = vunpack.c.l.b16 %v631
      %v664 = vunpack.c.l.b16 %v632
      %v665 = vunpack.c.l.b16 %v633
      %v666 = vunpack.c.l.b16 %v634
      %v667 = vunpack.c.l.b16 %v635
      %v668 = vunpack.c.l.b16 %v636
      %v669 = vunpack.c.l.b16 %v637
      %v670 = vunpack.c.l.b16 %v638
      %v671 = vunpack.c.l.b16 %v639
      %v672 = vunpack.c.l.b16 %v640
      %v673 = vunpack.c.l.b16 %v641
      %v674 = vunpack.c.l.b16 %v642
      %v675 = vunpack.c.l.b16 %v643
      %v676 = vunpack.c.l.b16 %v644
      %v677 = vpack.c.b16 %v662, %v661
      %v678 = vpack.c.b16 %v664, %v663
      %v679 = vpack.c.b16 %v666, %v665
      %v680 = vpack.c.b16 %v668, %v667
      %v681 = vpack.c.b16 %v670, %v669
      %v682 = vpack.c.b16 %v672, %v671
      %v683 = vpack.c.b16 %v674, %v673
      %v684 = vpack.c.b16 %v676, %v675
      %693 = vmatprep.subr.bf16.mxu0 0
      %694 = vmatpush1.bf16.msra.mxu0 %v677
      %695 = vmatprep.subr.bf16.mxu0 0
      %696 = vmatpush1.bf16.msra.mxu0 %v678
      %697 = vmatprep.subr.bf16.mxu0 0
      %698 = vmatpush1.bf16.msra.mxu0 %v679
      %699 = vmatprep.subr.bf16.mxu0 0
      %700 = vmatpush1.bf16.msra.mxu0 %v680
      %701 = vmatprep.subr.bf16.mxu0 0
      %702 = vmatpush1.bf16.msra.mxu0 %v681
      %703 = vmatprep.subr.bf16.mxu0 0
      %704 = vmatpush1.bf16.msra.mxu0 %v682
      %705 = vmatprep.subr.bf16.mxu0 0
      %706 = vmatpush1.bf16.msra.mxu0 %v683
      %707 = vmatprep.subr.bf16.mxu0 0
      %708 = vmatpush1.bf16.msra.mxu0 %v684
      %709 = vmatprep.subr.bf16.mxu0 0
      %710 = vmatpush1.bf16.msra.mxu0 0
      %711 = vmatprep.subr.bf16.mxu0 0
      %712 = vmatpush1.bf16.msra.mxu0 0
      %713 = vmatprep.subr.bf16.mxu0 0
      %714 = vmatpush1.bf16.msra.mxu0 0
      %715 = vmatprep.subr.bf16.mxu0 0
      %716 = vmatpush1.bf16.msra.mxu0 0
      %717 = vmatprep.subr.bf16.mxu0 0
      %718 = vmatpush1.bf16.msra.mxu0 0
      %719 = vmatprep.subr.bf16.mxu0 0
      %720 = vmatpush1.bf16.msra.mxu0 0
      %721 = vmatprep.subr.bf16.mxu0 0
      %722 = vmatpush1.bf16.msra.mxu0 0
      %723 = vmatprep.subr.bf16.mxu0 0
      %724 = vmatpush1.bf16.msra.mxu0 0
      %725 = vmatprep.mubr.bf16.mxu0 0
      %726 = vmatmul.mubr.bf16.gmra.mrb[0].mxu0 %v618
      %v727 = vpop.f32.mrb[0].mxu0
      %v728 = vadd.f32 0.0, %v727
      %v729 = vpop.f32.mrb[0].mxu0
      %v730 = vpop.f32.mrb[0].mxu0
      %v731 = vadd.f32 0.0, %v730
      %v732 = vpop.f32.mrb[0].mxu0
      %733 = vmatprep.mubr.bf16.mxu0 0
      %734 = vmatmul.mubr.bf16.gmra.mrb[0].mxu0 %v621
      %v735 = vpop.f32.mrb[0].mxu0
      %v736 = vadd.f32 0.0, %v735
      %v737 = vpop.f32.mrb[0].mxu0
      %v738 = vpop.f32.mrb[0].mxu0
      %v739 = vadd.f32 0.0, %v738
      %v740 = vpop.f32.mrb[0].mxu0
      %741 = vmatprep.mubr.bf16.mxu0 0
      %742 = vmatmul.mubr.bf16.gmra.mrb[0].mxu0 %v624
      %v743 = vpop.f32.mrb[0].mxu0
      %v744 = vadd.f32 0.0, %v743
      %v745 = vpop.f32.mrb[0].mxu0
      %v746 = vpop.f32.mrb[0].mxu0
      %v747 = vadd.f32 0.0, %v746
      %v748 = vpop.f32.mrb[0].mxu0
      %749 = vmatprep.mubr.bf16.mxu0 0
      %750 = vmatmul.mubr.bf16.gmra.mrb[0].mxu0 %v627
      %v751 = vpop.f32.mrb[0].mxu0
      %v752 = vadd.f32 0.0, %v751
      %v753 = vpop.f32.mrb[0].mxu0
      %v754 = vpop.f32.mrb[0].mxu0
      %v755 = vadd.f32 0.0, %v754
      %v756 = vpop.f32.mrb[0].mxu0
      %757 = vdwg.mxu0
      %vm758 = vcmask 130048
      %v759 = vsel %vm758, %v728, 0.0
      %v760 = vsel %vm758, %v731, 0.0
      %v761 = vadd.f32 %v759, %v760
      %v762 = vsel %vm758, %v736, 0.0
      %v763 = vadd.f32 %v761, %v762
      %v764 = vsel %vm758, %v739, 0.0
      %v765 = vadd.f32 %v763, %v764
      %v766 = vsel %vm758, %v744, 0.0
      %v767 = vadd.f32 %v765, %v766
      %v768 = vsel %vm758, %v747, 0.0
      %v769 = vadd.f32 %v767, %v768
      %v770 = vsel %vm758, %v752, 0.0
      %v771 = vadd.f32 %v769, %v770
      %v772 = vsel %vm758, %v755, 0.0
      %v773 = vadd.f32 %v771, %v772
      %v774 = vrot.slane %v773, 4
      %v775 = vadd.f32 %v773, %v774
      %v776 = vrot.slane %v775, 2
      %v777 = vadd.f32 %v775, %v776
      %v778 = vrot.slane %v777, 1
      %v779 = vadd.f32 %v777, %v778
      %v780 = vadd.f32 %v779, 0.0
      %v781 = vld [vmem:[%s234] sm:$0xe]
      %v782 = vld [vmem:[%s234 + $0x8] sm:$0xe]
      %v783 = vld [vmem:[%s234 + $0x10] sm:$0xe]
      %v784 = vld [vmem:[%s234 + $0x18] sm:$0xe]
      %v785 = vld [vmem:[%s234 + $0x20] sm:$0xe]
      %v786 = vld [vmem:[%s234 + $0x28] sm:$0xe]
      %v787 = vld [vmem:[%s234 + $0x30] sm:$0xe]
      %v788 = vld [vmem:[%s234 + $0x38] sm:$0xe]
      %vm805 = vcmask 1042432
      %vm806 = vcmask 1046532
      %vm807 = vmor %vm805, %vm806
      %v808 = vrot.slane %v781, 5
      %v809 = vrot.slane %v808, 4
      %v810 = vrot.slane %v254, 5
      %v811 = vsel %vm807, %v809, %v810
      %v812 = vrot.slane %v782, 5
      %v813 = vrot.slane %v812, 4
      %v814 = vrot.slane %v255, 5
      %v815 = vsel %vm807, %v813, %v814
      %v816 = vrot.slane %v783, 5
      %v817 = vrot.slane %v816, 4
      %v818 = vrot.slane %v256, 5
      %v819 = vsel %vm807, %v817, %v818
      %v820 = vrot.slane %v784, 5
      %v821 = vrot.slane %v820, 4
      %v822 = vrot.slane %v257, 5
      %v823 = vsel %vm807, %v821, %v822
      %v824 = vrot.slane %v785, 5
      %v825 = vrot.slane %v824, 4
      %v826 = vrot.slane %v258, 5
      %v827 = vsel %vm807, %v825, %v826
      %v828 = vrot.slane %v786, 5
      %v829 = vrot.slane %v828, 4
      %v830 = vrot.slane %v259, 5
      %v831 = vsel %vm807, %v829, %v830
      %v832 = vrot.slane %v787, 5
      %v833 = vrot.slane %v832, 4
      %v834 = vrot.slane %v260, 5
      %v835 = vsel %vm807, %v833, %v834
      %v836 = vrot.slane %v788, 5
      %v837 = vrot.slane %v836, 4
      %v838 = vrot.slane %v261, 5
      %v839 = vsel %vm807, %v837, %v838
      %v840 = vld [vmem:[%s377] sm:$0xe]
      %v841 = vld [vmem:[%s377 + $0x8] sm:$0xe]
      %v842 = vld [vmem:[%s377 + $0x10] sm:$0xe]
      %v843 = vld [vmem:[%s377 + $0x18] sm:$0xe]
      %v844 = vld [vmem:[%s377 + $0x20] sm:$0xe]
      %v845 = vld [vmem:[%s377 + $0x28] sm:$0xe]
      %v846 = vld [vmem:[%s377 + $0x30] sm:$0xe]
      %v847 = vld [vmem:[%s377 + $0x38] sm:$0xe]
      %v864 = vrot.slane %v840, 5
      %v865 = vrot.slane %v864, 4
      %v866 = vrot.slane %v386, 5
      %v867 = vsel %vm807, %v865, %v866
      %v868 = vrot.slane %v841, 5
      %v869 = vrot.slane %v868, 4
      %v870 = vrot.slane %v387, 5
      %v871 = vsel %vm807, %v869, %v870
      %v872 = vrot.slane %v842, 5
      %v873 = vrot.slane %v872, 4
      %v874 = vrot.slane %v388, 5
      %v875 = vsel %vm807, %v873, %v874
      %v876 = vrot.slane %v843, 5
      %v877 = vrot.slane %v876, 4
      %v878 = vrot.slane %v389, 5
      %v879 = vsel %vm807, %v877, %v878
      %v880 = vrot.slane %v844, 5
      %v881 = vrot.slane %v880, 4
      %v882 = vrot.slane %v390, 5
      %v883 = vsel %vm807, %v881, %v882
      %v884 = vrot.slane %v845, 5
      %v885 = vrot.slane %v884, 4
      %v886 = vrot.slane %v391, 5
      %v887 = vsel %vm807, %v885, %v886
      %v888 = vrot.slane %v846, 5
      %v889 = vrot.slane %v888, 4
      %v890 = vrot.slane %v392, 5
      %v891 = vsel %vm807, %v889, %v890
      %v892 = vrot.slane %v847, 5
      %v893 = vrot.slane %v892, 4
      %v894 = vrot.slane %v393, 5
      %v895 = vsel %vm807, %v893, %v894
      %v896 = vunpack.c.l.b16 %v811
      %v897 = vunpack.c.l.b16 %v815
      %v898 = vunpack.c.l.b16 %v819
      %v899 = vunpack.c.l.b16 %v823
      %v900 = vunpack.c.l.b16 %v827
      %v901 = vunpack.c.l.b16 %v831
      %v902 = vunpack.c.l.b16 %v835
      %v903 = vunpack.c.l.b16 %v839
      %v904 = vpack.c.b16 %v897, %v896
      %v905 = vpack.c.b16 %v899, %v898
      %v906 = vpack.c.b16 %v901, %v900
      %v907 = vpack.c.b16 %v903, %v902
      %908 = vrot.lane.b32.xlu0 %v904, 32
      %v909 = vpop.permute.xlu0 %908
      %910 = vrot.lane.b32.xlu0 %v905, 32
      %v911 = vpop.permute.xlu0 %910
      %912 = vrot.lane.b32.xlu0 %v906, 32
      %v913 = vpop.permute.xlu0 %912
      %914 = vrot.lane.b32.xlu0 %v907, 32
      %v915 = vpop.permute.xlu0 %914
      %916 = vrot.lane.b32.xlu0 %v582, 64
      %v917 = vpop.permute.xlu0 %916
      %918 = vrot.lane.b32.xlu0 %v583, 64
      %v919 = vpop.permute.xlu0 %918
      %920 = vrot.lane.b32.xlu0 %v584, 64
      %v921 = vpop.permute.xlu0 %920
      %922 = vrot.lane.b32.xlu0 %v585, 64
      %v923 = vpop.permute.xlu0 %922
      %v924 = vunpack.c.l.b16 %v867
      %v925 = vunpack.c.l.b16 %v871
      %v926 = vunpack.c.l.b16 %v875
      %v927 = vunpack.c.l.b16 %v879
      %v928 = vunpack.c.l.b16 %v883
      %v929 = vunpack.c.l.b16 %v887
      %v930 = vunpack.c.l.b16 %v891
      %v931 = vunpack.c.l.b16 %v895
      %v932 = vpack.c.b16 %v925, %v924
      %v933 = vpack.c.b16 %v927, %v926
      %v934 = vpack.c.b16 %v929, %v928
      %v935 = vpack.c.b16 %v931, %v930
      %936 = vrot.lane.b32.xlu0 %v932, 96
      %v937 = vpop.permute.xlu0 %936
      %938 = vrot.lane.b32.xlu0 %v933, 96
      %v939 = vpop.permute.xlu0 %938
      %940 = vrot.lane.b32.xlu0 %v934, 96
      %v941 = vpop.permute.xlu0 %940
      %942 = vrot.lane.b32.xlu0 %v935, 96
      %v943 = vpop.permute.xlu0 %942
      %v946 = vsel %vm594, %v534, %v909
      %v949 = vsel %vm594, %v535, %v911
      %v952 = vsel %vm594, %v536, %v913
      %v955 = vsel %vm594, %v537, %v915
      %v957 = vsel %vm607, %v946, %v917
      %v959 = vsel %vm607, %v949, %v919
      %v961 = vsel %vm607, %v952, %v921
      %v963 = vsel %vm607, %v955, %v923
      %v965 = vsel %vm616, %v957, %v937
      %v968 = vsel %vm616, %v959, %v939
      %v971 = vsel %vm616, %v961, %v941
      %v974 = vsel %vm616, %v963, %v943
      %s976 = scalar_lea.vmem %s1, 64
      %v977 = vld [vmem:[%s976] sm:$0xf]
      %v978 = vld [vmem:[%s976 + $0x4] sm:$0xf]
      %v979 = vld [vmem:[%s976 + $0x8] sm:$0xf]
      %v980 = vld [vmem:[%s976 + $0xc] sm:$0xf]
      %v981 = vld [vmem:[%s976 + $0x10] sm:$0xf]
      %v982 = vld [vmem:[%s976 + $0x14] sm:$0xf]
      %v983 = vld [vmem:[%s976 + $0x18] sm:$0xf]
      %v984 = vld [vmem:[%s976 + $0x1c] sm:$0xf]
      %v985 = vld [vmem:[%s976 + $0x20] sm:$0xf]
      %v986 = vld [vmem:[%s976 + $0x24] sm:$0xf]
      %v987 = vld [vmem:[%s976 + $0x28] sm:$0xf]
      %v988 = vld [vmem:[%s976 + $0x2c] sm:$0xf]
      %v989 = vld [vmem:[%s976 + $0x30] sm:$0xf]
      %v990 = vld [vmem:[%s976 + $0x34] sm:$0xf]
      %v991 = vld [vmem:[%s976 + $0x38] sm:$0xf]
      %v992 = vld [vmem:[%s976 + $0x3c] sm:$0xf]
      %v1009 = vunpack.c.l.b16 %v977
      %v1010 = vunpack.c.l.b16 %v978
      %v1011 = vunpack.c.l.b16 %v979
      %v1012 = vunpack.c.l.b16 %v980
      %v1013 = vunpack.c.l.b16 %v981
      %v1014 = vunpack.c.l.b16 %v982
      %v1015 = vunpack.c.l.b16 %v983
      %v1016 = vunpack.c.l.b16 %v984
      %v1017 = vunpack.c.l.b16 %v985
      %v1018 = vunpack.c.l.b16 %v986
      %v1019 = vunpack.c.l.b16 %v987
      %v1020 = vunpack.c.l.b16 %v988
      %v1021 = vunpack.c.l.b16 %v989
      %v1022 = vunpack.c.l.b16 %v990
      %v1023 = vunpack.c.l.b16 %v991
      %v1024 = vunpack.c.l.b16 %v992
      %v1025 = vpack.c.b16 %v1010, %v1009
      %v1026 = vpack.c.b16 %v1012, %v1011
      %v1027 = vpack.c.b16 %v1014, %v1013
      %v1028 = vpack.c.b16 %v1016, %v1015
      %v1029 = vpack.c.b16 %v1018, %v1017
      %v1030 = vpack.c.b16 %v1020, %v1019
      %v1031 = vpack.c.b16 %v1022, %v1021
      %v1032 = vpack.c.b16 %v1024, %v1023
      %1041 = vmatprep.subr.bf16.mxu0 0
      %1042 = vmatpush1.bf16.msra.mxu0 %v1025
      %1043 = vmatprep.subr.bf16.mxu0 0
      %1044 = vmatpush1.bf16.msra.mxu0 %v1026
      %1045 = vmatprep.subr.bf16.mxu0 0
      %1046 = vmatpush1.bf16.msra.mxu0 %v1027
      %1047 = vmatprep.subr.bf16.mxu0 0
      %1048 = vmatpush1.bf16.msra.mxu0 %v1028
      %1049 = vmatprep.subr.bf16.mxu0 0
      %1050 = vmatpush1.bf16.msra.mxu0 %v1029
      %1051 = vmatprep.subr.bf16.mxu0 0
      %1052 = vmatpush1.bf16.msra.mxu0 %v1030
      %1053 = vmatprep.subr.bf16.mxu0 0
      %1054 = vmatpush1.bf16.msra.mxu0 %v1031
      %1055 = vmatprep.subr.bf16.mxu0 0
      %1056 = vmatpush1.bf16.msra.mxu0 %v1032
      %1057 = vmatprep.subr.bf16.mxu0 0
      %1058 = vmatpush1.bf16.msra.mxu0 0
      %1059 = vmatprep.subr.bf16.mxu0 0
      %1060 = vmatpush1.bf16.msra.mxu0 0
      %1061 = vmatprep.subr.bf16.mxu0 0
      %1062 = vmatpush1.bf16.msra.mxu0 0
      %1063 = vmatprep.subr.bf16.mxu0 0
      %1064 = vmatpush1.bf16.msra.mxu0 0
      %1065 = vmatprep.subr.bf16.mxu0 0
      %1066 = vmatpush1.bf16.msra.mxu0 0
      %1067 = vmatprep.subr.bf16.mxu0 0
      %1068 = vmatpush1.bf16.msra.mxu0 0
      %1069 = vmatprep.subr.bf16.mxu0 0
      %1070 = vmatpush1.bf16.msra.mxu0 0
      %1071 = vmatprep.subr.bf16.mxu0 0
      %1072 = vmatpush1.bf16.msra.mxu0 0
      %1073 = vmatprep.mubr.bf16.mxu0 0
      %1074 = vmatmul.mubr.bf16.gmra.mrb[0].mxu0 %v965
      %v1075 = vpop.f32.mrb[0].mxu0
      %v1076 = vadd.f32 0.0, %v1075
      %v1077 = vpop.f32.mrb[0].mxu0
      %v1078 = vpop.f32.mrb[0].mxu0
      %v1079 = vadd.f32 0.0, %v1078
      %v1080 = vpop.f32.mrb[0].mxu0
      %1081 = vmatprep.mubr.bf16.mxu0 0
      %1082 = vmatmul.mubr.bf16.gmra.mrb[0].mxu0 %v968
      %v1083 = vpop.f32.mrb[0].mxu0
      %v1084 = vadd.f32 0.0, %v1083
      %v1085 = vpop.f32.mrb[0].mxu0
      %v1086 = vpop.f32.mrb[0].mxu0
      %v1087 = vadd.f32 0.0, %v1086
      %v1088 = vpop.f32.mrb[0].mxu0
      %1089 = vmatprep.mubr.bf16.mxu0 0
      %1090 = vmatmul.mubr.bf16.gmra.mrb[0].mxu0 %v971
      %v1091 = vpop.f32.mrb[0].mxu0
      %v1092 = vadd.f32 0.0, %v1091
      %v1093 = vpop.f32.mrb[0].mxu0
      %v1094 = vpop.f32.mrb[0].mxu0
      %v1095 = vadd.f32 0.0, %v1094
      %v1096 = vpop.f32.mrb[0].mxu0
      %1097 = vmatprep.mubr.bf16.mxu0 0
      %1098 = vmatmul.mubr.bf16.gmra.mrb[0].mxu0 %v974
      %v1099 = vpop.f32.mrb[0].mxu0
      %v1100 = vadd.f32 0.0, %v1099
      %v1101 = vpop.f32.mrb[0].mxu0
      %v1102 = vpop.f32.mrb[0].mxu0
      %v1103 = vadd.f32 0.0, %v1102
      %v1104 = vpop.f32.mrb[0].mxu0
      %1105 = vdwg.mxu0
      %v1106 = vsel %vm758, %v1076, 0.0
      %v1107 = vsel %vm758, %v1079, 0.0
      %v1108 = vadd.f32 %v1106, %v1107
      %v1109 = vsel %vm758, %v1084, 0.0
      %v1110 = vadd.f32 %v1108, %v1109
      %v1111 = vsel %vm758, %v1087, 0.0
      %v1112 = vadd.f32 %v1110, %v1111
      %v1113 = vsel %vm758, %v1092, 0.0
      %v1114 = vadd.f32 %v1112, %v1113
      %v1115 = vsel %vm758, %v1095, 0.0
      %v1116 = vadd.f32 %v1114, %v1115
      %v1117 = vsel %vm758, %v1100, 0.0
      %v1118 = vadd.f32 %v1116, %v1117
      %v1119 = vsel %vm758, %v1103, 0.0
      %v1120 = vadd.f32 %v1118, %v1119
      %v1121 = vrot.slane %v1120, 4
      %v1122 = vadd.f32 %v1120, %v1121
      %v1123 = vrot.slane %v1122, 2
      %v1124 = vadd.f32 %v1122, %v1123
      %v1125 = vrot.slane %v1124, 1
      %v1126 = vadd.f32 %v1124, %v1125
      %v1127 = vadd.f32 %v780, %v1126
      %s1128 = scalar_lea.vmem %s234, 16
      %v1129 = vld [vmem:[%s1128] sm:$0xf]
      %v1130 = vld [vmem:[%s1128 + $0x8] sm:$0xf]
      %v1131 = vld [vmem:[%s1128 + $0x10] sm:$0xf]
      %v1132 = vld [vmem:[%s1128 + $0x18] sm:$0xf]
      %v1133 = vld [vmem:[%s1128 + $0x20] sm:$0xf]
      %v1134 = vld [vmem:[%s1128 + $0x28] sm:$0xf]
      %v1135 = vld [vmem:[%s1128 + $0x30] sm:$0xf]
      %v1136 = vld [vmem:[%s1128 + $0x38] sm:$0xf]
      %v1137 = vld [vmem:[%s1128 + $0x4] sm:$0x1]
      %v1138 = vld [vmem:[%s1128 + $0xc] sm:$0x1]
      %v1139 = vld [vmem:[%s1128 + $0x14] sm:$0x1]
      %v1140 = vld [vmem:[%s1128 + $0x1c] sm:$0x1]
      %v1141 = vld [vmem:[%s1128 + $0x24] sm:$0x1]
      %v1142 = vld [vmem:[%s1128 + $0x2c] sm:$0x1]
      %v1143 = vld [vmem:[%s1128 + $0x34] sm:$0x1]
      %v1144 = vld [vmem:[%s1128 + $0x3c] sm:$0x1]
      %v1146 = vshrl.u32 %v1129, 16
      %v1148 = vrot.slane %v1146, 4
      %v1149 = vshll.u32 %v1129, 16
      %v1151 = vrot.slane %v1149, 5
      %v1152 = vor.u32 %v1148, %v1151
      %v1153 = vrot.slane %v1152, 4
      %v1155 = vshll.u32 %v1137, 16
      %v1157 = vrot.slane %v1155, 5
      %v1158 = vsel %vm264, %v1153, %v1157
      %v1160 = vshrl.u32 %v1130, 16
      %v1162 = vrot.slane %v1160, 4
      %v1163 = vshll.u32 %v1130, 16
      %v1165 = vrot.slane %v1163, 5
      %v1166 = vor.u32 %v1162, %v1165
      %v1167 = vrot.slane %v1166, 4
      %v1169 = vshll.u32 %v1138, 16
      %v1171 = vrot.slane %v1169, 5
      %v1172 = vsel %vm264, %v1167, %v1171
      %v1174 = vshrl.u32 %v1131, 16
      %v1176 = vrot.slane %v1174, 4
      %v1177 = vshll.u32 %v1131, 16
      %v1179 = vrot.slane %v1177, 5
      %v1180 = vor.u32 %v1176, %v1179
      %v1181 = vrot.slane %v1180, 4
      %v1183 = vshll.u32 %v1139, 16
      %v1185 = vrot.slane %v1183, 5
      %v1186 = vsel %vm264, %v1181, %v1185
      %v1188 = vshrl.u32 %v1132, 16
      %v1190 = vrot.slane %v1188, 4
      %v1191 = vshll.u32 %v1132, 16
      %v1193 = vrot.slane %v1191, 5
      %v1194 = vor.u32 %v1190, %v1193
      %v1195 = vrot.slane %v1194, 4
      %v1197 = vshll.u32 %v1140, 16
      %v1199 = vrot.slane %v1197, 5
      %v1200 = vsel %vm264, %v1195, %v1199
      %v1202 = vshrl.u32 %v1133, 16
      %v1204 = vrot.slane %v1202, 4
      %v1205 = vshll.u32 %v1133, 16
      %v1207 = vrot.slane %v1205, 5
      %v1208 = vor.u32 %v1204, %v1207
      %v1209 = vrot.slane %v1208, 4
      %v1211 = vshll.u32 %v1141, 16
      %v1213 = vrot.slane %v1211, 5
      %v1214 = vsel %vm264, %v1209, %v1213
      %v1216 = vshrl.u32 %v1134, 16
      %v1218 = vrot.slane %v1216, 4
      %v1219 = vshll.u32 %v1134, 16
      %v1221 = vrot.slane %v1219, 5
      %v1222 = vor.u32 %v1218, %v1221
      %v1223 = vrot.slane %v1222, 4
      %v1225 = vshll.u32 %v1142, 16
      %v1227 = vrot.slane %v1225, 5
      %v1228 = vsel %vm264, %v1223, %v1227
      %v1230 = vshrl.u32 %v1135, 16
      %v1232 = vrot.slane %v1230, 4
      %v1233 = vshll.u32 %v1135, 16
      %v1235 = vrot.slane %v1233, 5
      %v1236 = vor.u32 %v1232, %v1235
      %v1237 = vrot.slane %v1236, 4
      %v1239 = vshll.u32 %v1143, 16
      %v1241 = vrot.slane %v1239, 5
      %v1242 = vsel %vm264, %v1237, %v1241
      %v1244 = vshrl.u32 %v1136, 16
      %v1246 = vrot.slane %v1244, 4
      %v1247 = vshll.u32 %v1136, 16
      %v1249 = vrot.slane %v1247, 5
      %v1250 = vor.u32 %v1246, %v1249
      %v1251 = vrot.slane %v1250, 4
      %v1253 = vshll.u32 %v1144, 16
      %v1255 = vrot.slane %v1253, 5
      %v1256 = vsel %vm264, %v1251, %v1255
      %1257 = vrot.lane.b32.xlu0 %v582, 32
      %v1258 = vpop.permute.xlu0 %1257
      %1259 = vrot.lane.b32.xlu0 %v583, 32
      %v1260 = vpop.permute.xlu0 %1259
      %1261 = vrot.lane.b32.xlu0 %v584, 32
      %v1262 = vpop.permute.xlu0 %1261
      %1263 = vrot.lane.b32.xlu0 %v585, 32
      %v1264 = vpop.permute.xlu0 %1263
      %v1273 = vunpack.c.l.b16 %v1129
      %v1274 = vunpack.c.l.b16 %v1130
      %v1275 = vunpack.c.l.b16 %v1131
      %v1276 = vunpack.c.l.b16 %v1132
      %v1277 = vunpack.c.l.b16 %v1133
      %v1278 = vunpack.c.l.b16 %v1134
      %v1279 = vunpack.c.l.b16 %v1135
      %v1280 = vunpack.c.l.b16 %v1136
      %v1281 = vpack.c.b16 %v1274, %v1273
      %v1282 = vpack.c.b16 %v1276, %v1275
      %v1283 = vpack.c.b16 %v1278, %v1277
      %v1284 = vpack.c.b16 %v1280, %v1279
      %1285 = vrot.lane.b32.xlu0 %v1281, 64
      %v1286 = vpop.permute.xlu0 %1285
      %1287 = vrot.lane.b32.xlu0 %v1282, 64
      %v1288 = vpop.permute.xlu0 %1287
      %1289 = vrot.lane.b32.xlu0 %v1283, 64
      %v1290 = vpop.permute.xlu0 %1289
      %1291 = vrot.lane.b32.xlu0 %v1284, 64
      %v1292 = vpop.permute.xlu0 %1291
      %v1293 = vunpack.c.l.b16 %v1158
      %v1294 = vunpack.c.l.b16 %v1172
      %v1295 = vunpack.c.l.b16 %v1186
      %v1296 = vunpack.c.l.b16 %v1200
      %v1297 = vunpack.c.l.b16 %v1214
      %v1298 = vunpack.c.l.b16 %v1228
      %v1299 = vunpack.c.l.b16 %v1242
      %v1300 = vunpack.c.l.b16 %v1256
      %v1301 = vpack.c.b16 %v1294, %v1293
      %v1302 = vpack.c.b16 %v1296, %v1295
      %v1303 = vpack.c.b16 %v1298, %v1297
      %v1304 = vpack.c.b16 %v1300, %v1299
      %1305 = vrot.lane.b32.xlu0 %v1301, 96
      %v1306 = vpop.permute.xlu0 %1305
      %1307 = vrot.lane.b32.xlu0 %v1302, 96
      %v1308 = vpop.permute.xlu0 %1307
      %1309 = vrot.lane.b32.xlu0 %v1303, 96
      %v1310 = vpop.permute.xlu0 %1309
      %1311 = vrot.lane.b32.xlu0 %v1304, 96
      %v1312 = vpop.permute.xlu0 %1311
      %v1315 = vsel %vm594, %v562, %v1258
      %v1318 = vsel %vm594, %v563, %v1260
      %v1321 = vsel %vm594, %v564, %v1262
      %v1324 = vsel %vm594, %v565, %v1264
      %v1326 = vsel %vm607, %v1315, %v1286
      %v1328 = vsel %vm607, %v1318, %v1288
      %v1330 = vsel %vm607, %v1321, %v1290
      %v1332 = vsel %vm607, %v1324, %v1292
      %v1334 = vsel %vm616, %v1326, %v1306
      %v1337 = vsel %vm616, %v1328, %v1308
      %v1340 = vsel %vm616, %v1330, %v1310
      %v1343 = vsel %vm616, %v1332, %v1312
      %s1345 = scalar_lea.vmem %s1, 128
      %v1346 = vld [vmem:[%s1345] sm:$0xf]
      %v1347 = vld [vmem:[%s1345 + $0x4] sm:$0xf]
      %v1348 = vld [vmem:[%s1345 + $0x8] sm:$0xf]
      %v1349 = vld [vmem:[%s1345 + $0xc] sm:$0xf]
      %v1350 = vld [vmem:[%s1345 + $0x10] sm:$0xf]
      %v1351 = vld [vmem:[%s1345 + $0x14] sm:$0xf]
      %v1352 = vld [vmem:[%s1345 + $0x18] sm:$0xf]
      %v1353 = vld [vmem:[%s1345 + $0x1c] sm:$0xf]
      %v1354 = vld [vmem:[%s1345 + $0x20] sm:$0xf]
      %v1355 = vld [vmem:[%s1345 + $0x24] sm:$0xf]
      %v1356 = vld [vmem:[%s1345 + $0x28] sm:$0xf]
      %v1357 = vld [vmem:[%s1345 + $0x2c] sm:$0xf]
      %v1358 = vld [vmem:[%s1345 + $0x30] sm:$0xf]
      %v1359 = vld [vmem:[%s1345 + $0x34] sm:$0xf]
      %v1360 = vld [vmem:[%s1345 + $0x38] sm:$0xf]
      %v1361 = vld [vmem:[%s1345 + $0x3c] sm:$0xf]
      %v1378 = vunpack.c.l.b16 %v1346
      %v1379 = vunpack.c.l.b16 %v1347
      %v1380 = vunpack.c.l.b16 %v1348
      %v1381 = vunpack.c.l.b16 %v1349
      %v1382 = vunpack.c.l.b16 %v1350
      %v1383 = vunpack.c.l.b16 %v1351
      %v1384 = vunpack.c.l.b16 %v1352
      %v1385 = vunpack.c.l.b16 %v1353
      %v1386 = vunpack.c.l.b16 %v1354
      %v1387 = vunpack.c.l.b16 %v1355
      %v1388 = vunpack.c.l.b16 %v1356
      %v1389 = vunpack.c.l.b16 %v1357
      %v1390 = vunpack.c.l.b16 %v1358
      %v1391 = vunpack.c.l.b16 %v1359
      %v1392 = vunpack.c.l.b16 %v1360
      %v1393 = vunpack.c.l.b16 %v1361
      %v1394 = vpack.c.b16 %v1379, %v1378
      %v1395 = vpack.c.b16 %v1381, %v1380
      %v1396 = vpack.c.b16 %v1383, %v1382
      %v1397 = vpack.c.b16 %v1385, %v1384
      %v1398 = vpack.c.b16 %v1387, %v1386
      %v1399 = vpack.c.b16 %v1389, %v1388
      %v1400 = vpack.c.b16 %v1391, %v1390
      %v1401 = vpack.c.b16 %v1393, %v1392
      %1410 = vmatprep.subr.bf16.mxu0 0
      %1411 = vmatpush1.bf16.msra.mxu0 %v1394
      %1412 = vmatprep.subr.bf16.mxu0 0
      %1413 = vmatpush1.bf16.msra.mxu0 %v1395
      %1414 = vmatprep.subr.bf16.mxu0 0
      %1415 = vmatpush1.bf16.msra.mxu0 %v1396
      %1416 = vmatprep.subr.bf16.mxu0 0
      %1417 = vmatpush1.bf16.msra.mxu0 %v1397
      %1418 = vmatprep.subr.bf16.mxu0 0
      %1419 = vmatpush1.bf16.msra.mxu0 %v1398
      %1420 = vmatprep.subr.bf16.mxu0 0
      %1421 = vmatpush1.bf16.msra.mxu0 %v1399
      %1422 = vmatprep.subr.bf16.mxu0 0
      %1423 = vmatpush1.bf16.msra.mxu0 %v1400
      %1424 = vmatprep.subr.bf16.mxu0 0
      %1425 = vmatpush1.bf16.msra.mxu0 %v1401
      %1426 = vmatprep.subr.bf16.mxu0 0
      %1427 = vmatpush1.bf16.msra.mxu0 0
      %1428 = vmatprep.subr.bf16.mxu0 0
      %1429 = vmatpush1.bf16.msra.mxu0 0
      %1430 = vmatprep.subr.bf16.mxu0 0
      %1431 = vmatpush1.bf16.msra.mxu0 0
      %1432 = vmatprep.subr.bf16.mxu0 0
      %1433 = vmatpush1.bf16.msra.mxu0 0
      %1434 = vmatprep.subr.bf16.mxu0 0
      %1435 = vmatpush1.bf16.msra.mxu0 0
      %1436 = vmatprep.subr.bf16.mxu0 0
      %1437 = vmatpush1.bf16.msra.mxu0 0
      %1438 = vmatprep.subr.bf16.mxu0 0
      %1439 = vmatpush1.bf16.msra.mxu0 0
      %1440 = vmatprep.subr.bf16.mxu0 0
      %1441 = vmatpush1.bf16.msra.mxu0 0
      %1442 = vmatprep.mubr.bf16.mxu0 0
      %1443 = vmatmul.mubr.bf16.gmra.mrb[0].mxu0 %v1334
      %v1444 = vpop.f32.mrb[0].mxu0
      %v1445 = vadd.f32 0.0, %v1444
      %v1446 = vpop.f32.mrb[0].mxu0
      %v1447 = vpop.f32.mrb[0].mxu0
      %v1448 = vadd.f32 0.0, %v1447
      %v1449 = vpop.f32.mrb[0].mxu0
      %1450 = vmatprep.mubr.bf16.mxu0 0
      %1451 = vmatmul.mubr.bf16.gmra.mrb[0].mxu0 %v1337
      %v1452 = vpop.f32.mrb[0].mxu0
      %v1453 = vadd.f32 0.0, %v1452
      %v1454 = vpop.f32.mrb[0].mxu0
      %v1455 = vpop.f32.mrb[0].mxu0
      %v1456 = vadd.f32 0.0, %v1455
      %v1457 = vpop.f32.mrb[0].mxu0
      %1458 = vmatprep.mubr.bf16.mxu0 0
      %1459 = vmatmul.mubr.bf16.gmra.mrb[0].mxu0 %v1340
      %v1460 = vpop.f32.mrb[0].mxu0
      %v1461 = vadd.f32 0.0, %v1460
      %v1462 = vpop.f32.mrb[0].mxu0
      %v1463 = vpop.f32.mrb[0].mxu0
      %v1464 = vadd.f32 0.0, %v1463
      %v1465 = vpop.f32.mrb[0].mxu0
      %1466 = vmatprep.mubr.bf16.mxu0 0
      %1467 = vmatmul.mubr.bf16.gmra.mrb[0].mxu0 %v1343
      %v1468 = vpop.f32.mrb[0].mxu0
      %v1469 = vadd.f32 0.0, %v1468
      %v1470 = vpop.f32.mrb[0].mxu0
      %v1471 = vpop.f32.mrb[0].mxu0
      %v1472 = vadd.f32 0.0, %v1471
      %v1473 = vpop.f32.mrb[0].mxu0
      %1474 = vdwg.mxu0
      %v1475 = vsel %vm758, %v1445, 0.0
      %v1476 = vsel %vm758, %v1448, 0.0
      %v1477 = vadd.f32 %v1475, %v1476
      %v1478 = vsel %vm758, %v1453, 0.0
      %v1479 = vadd.f32 %v1477, %v1478
      %v1480 = vsel %vm758, %v1456, 0.0
      %v1481 = vadd.f32 %v1479, %v1480
      %v1482 = vsel %vm758, %v1461, 0.0
      %v1483 = vadd.f32 %v1481, %v1482
      %v1484 = vsel %vm758, %v1464, 0.0
      %v1485 = vadd.f32 %v1483, %v1484
      %v1486 = vsel %vm758, %v1469, 0.0
      %v1487 = vadd.f32 %v1485, %v1486
      %v1488 = vsel %vm758, %v1472, 0.0
      %v1489 = vadd.f32 %v1487, %v1488
      %v1490 = vrot.slane %v1489, 4
      %v1491 = vadd.f32 %v1489, %v1490
      %v1492 = vrot.slane %v1491, 2
      %v1493 = vadd.f32 %v1491, %v1492
      %v1494 = vrot.slane %v1493, 1
      %v1495 = vadd.f32 %v1493, %v1494
      %v1496 = vadd.f32 %v1127, %v1495
      %v1497 = vld [vmem:[%s1128] sm:$0xe]
      %v1498 = vld [vmem:[%s1128 + $0x8] sm:$0xe]
      %v1499 = vld [vmem:[%s1128 + $0x10] sm:$0xe]
      %v1500 = vld [vmem:[%s1128 + $0x18] sm:$0xe]
      %v1501 = vld [vmem:[%s1128 + $0x20] sm:$0xe]
      %v1502 = vld [vmem:[%s1128 + $0x28] sm:$0xe]
      %v1503 = vld [vmem:[%s1128 + $0x30] sm:$0xe]
      %v1504 = vld [vmem:[%s1128 + $0x38] sm:$0xe]
      %v1521 = vrot.slane %v1497, 5
      %v1522 = vrot.slane %v1521, 4
      %v1523 = vrot.slane %v1137, 5
      %v1524 = vsel %vm807, %v1522, %v1523
      %v1525 = vrot.slane %v1498, 5
      %v1526 = vrot.slane %v1525, 4
      %v1527 = vrot.slane %v1138, 5
      %v1528 = vsel %vm807, %v1526, %v1527
      %v1529 = vrot.slane %v1499, 5
      %v1530 = vrot.slane %v1529, 4
      %v1531 = vrot.slane %v1139, 5
      %v1532 = vsel %vm807, %v1530, %v1531
      %v1533 = vrot.slane %v1500, 5
      %v1534 = vrot.slane %v1533, 4
      %v1535 = vrot.slane %v1140, 5
      %v1536 = vsel %vm807, %v1534, %v1535
      %v1537 = vrot.slane %v1501, 5
      %v1538 = vrot.slane %v1537, 4
      %v1539 = vrot.slane %v1141, 5
      %v1540 = vsel %vm807, %v1538, %v1539
      %v1541 = vrot.slane %v1502, 5
      %v1542 = vrot.slane %v1541, 4
      %v1543 = vrot.slane %v1142, 5
      %v1544 = vsel %vm807, %v1542, %v1543
      %v1545 = vrot.slane %v1503, 5
      %v1546 = vrot.slane %v1545, 4
      %v1547 = vrot.slane %v1143, 5
      %v1548 = vsel %vm807, %v1546, %v1547
      %v1549 = vrot.slane %v1504, 5
      %v1550 = vrot.slane %v1549, 4
      %v1551 = vrot.slane %v1144, 5
      %v1552 = vsel %vm807, %v1550, %v1551
      %1553 = vrot.lane.b32.xlu0 %v932, 32
      %v1554 = vpop.permute.xlu0 %1553
      %1555 = vrot.lane.b32.xlu0 %v933, 32
      %v1556 = vpop.permute.xlu0 %1555
      %1557 = vrot.lane.b32.xlu0 %v934, 32
      %v1558 = vpop.permute.xlu0 %1557
      %1559 = vrot.lane.b32.xlu0 %v935, 32
      %v1560 = vpop.permute.xlu0 %1559
      %1561 = vrot.lane.b32.xlu0 %v1301, 64
      %v1562 = vpop.permute.xlu0 %1561
      %1563 = vrot.lane.b32.xlu0 %v1302, 64
      %v1564 = vpop.permute.xlu0 %1563
      %1565 = vrot.lane.b32.xlu0 %v1303, 64
      %v1566 = vpop.permute.xlu0 %1565
      %1567 = vrot.lane.b32.xlu0 %v1304, 64
      %v1568 = vpop.permute.xlu0 %1567
      %v1569 = vunpack.c.l.b16 %v1524
      %v1570 = vunpack.c.l.b16 %v1528
      %v1571 = vunpack.c.l.b16 %v1532
      %v1572 = vunpack.c.l.b16 %v1536
      %v1573 = vunpack.c.l.b16 %v1540
      %v1574 = vunpack.c.l.b16 %v1544
      %v1575 = vunpack.c.l.b16 %v1548
      %v1576 = vunpack.c.l.b16 %v1552
      %v1577 = vpack.c.b16 %v1570, %v1569
      %v1578 = vpack.c.b16 %v1572, %v1571
      %v1579 = vpack.c.b16 %v1574, %v1573
      %v1580 = vpack.c.b16 %v1576, %v1575
      %1581 = vrot.lane.b32.xlu0 %v1577, 96
      %v1582 = vpop.permute.xlu0 %1581
      %1583 = vrot.lane.b32.xlu0 %v1578, 96
      %v1584 = vpop.permute.xlu0 %1583
      %1585 = vrot.lane.b32.xlu0 %v1579, 96
      %v1586 = vpop.permute.xlu0 %1585
      %1587 = vrot.lane.b32.xlu0 %v1580, 96
      %v1588 = vpop.permute.xlu0 %1587
      %v1591 = vsel %vm594, %v582, %v1554
      %v1594 = vsel %vm594, %v583, %v1556
      %v1597 = vsel %vm594, %v584, %v1558
      %v1600 = vsel %vm594, %v585, %v1560
      %v1602 = vsel %vm607, %v1591, %v1562
      %v1604 = vsel %vm607, %v1594, %v1564
      %v1606 = vsel %vm607, %v1597, %v1566
      %v1608 = vsel %vm607, %v1600, %v1568
      %v1610 = vsel %vm616, %v1602, %v1582
      %v1613 = vsel %vm616, %v1604, %v1584
      %v1616 = vsel %vm616, %v1606, %v1586
      %v1619 = vsel %vm616, %v1608, %v1588
      %s1621 = scalar_lea.vmem %s1, 192
      %v1622 = vld [vmem:[%s1621] sm:$0xf]
      %v1623 = vld [vmem:[%s1621 + $0x4] sm:$0xf]
      %v1624 = vld [vmem:[%s1621 + $0x8] sm:$0xf]
      %v1625 = vld [vmem:[%s1621 + $0xc] sm:$0xf]
      %v1626 = vld [vmem:[%s1621 + $0x10] sm:$0xf]
      %v1627 = vld [vmem:[%s1621 + $0x14] sm:$0xf]
      %v1628 = vld [vmem:[%s1621 + $0x18] sm:$0xf]
      %v1629 = vld [vmem:[%s1621 + $0x1c] sm:$0xf]
      %v1630 = vld [vmem:[%s1621 + $0x20] sm:$0xf]
      %v1631 = vld [vmem:[%s1621 + $0x24] sm:$0xf]
      %v1632 = vld [vmem:[%s1621 + $0x28] sm:$0xf]
      %v1633 = vld [vmem:[%s1621 + $0x2c] sm:$0xf]
      %v1634 = vld [vmem:[%s1621 + $0x30] sm:$0xf]
      %v1635 = vld [vmem:[%s1621 + $0x34] sm:$0xf]
      %v1636 = vld [vmem:[%s1621 + $0x38] sm:$0xf]
      %v1637 = vld [vmem:[%s1621 + $0x3c] sm:$0xf]
      %v1654 = vunpack.c.l.b16 %v1622
      %v1655 = vunpack.c.l.b16 %v1623
      %v1656 = vunpack.c.l.b16 %v1624
      %v1657 = vunpack.c.l.b16 %v1625
      %v1658 = vunpack.c.l.b16 %v1626
      %v1659 = vunpack.c.l.b16 %v1627
      %v1660 = vunpack.c.l.b16 %v1628
      %v1661 = vunpack.c.l.b16 %v1629
      %v1662 = vunpack.c.l.b16 %v1630
      %v1663 = vunpack.c.l.b16 %v1631
      %v1664 = vunpack.c.l.b16 %v1632
      %v1665 = vunpack.c.l.b16 %v1633
      %v1666 = vunpack.c.l.b16 %v1634
      %v1667 = vunpack.c.l.b16 %v1635
      %v1668 = vunpack.c.l.b16 %v1636
      %v1669 = vunpack.c.l.b16 %v1637
      %v1670 = vpack.c.b16 %v1655, %v1654
      %v1671 = vpack.c.b16 %v1657, %v1656
      %v1672 = vpack.c.b16 %v1659, %v1658
      %v1673 = vpack.c.b16 %v1661, %v1660
      %v1674 = vpack.c.b16 %v1663, %v1662
      %v1675 = vpack.c.b16 %v1665, %v1664
      %v1676 = vpack.c.b16 %v1667, %v1666
      %v1677 = vpack.c.b16 %v1669, %v1668
      %1686 = vmatprep.subr.bf16.mxu0 0
      %1687 = vmatpush1.bf16.msra.mxu0 %v1670
      %1688 = vmatprep.subr.bf16.mxu0 0
      %1689 = vmatpush1.bf16.msra.mxu0 %v1671
      %1690 = vmatprep.subr.bf16.mxu0 0
      %1691 = vmatpush1.bf16.msra.mxu0 %v1672
      %1692 = vmatprep.subr.bf16.mxu0 0
      %1693 = vmatpush1.bf16.msra.mxu0 %v1673
      %1694 = vmatprep.subr.bf16.mxu0 0
      %1695 = vmatpush1.bf16.msra.mxu0 %v1674
      %1696 = vmatprep.subr.bf16.mxu0 0
      %1697 = vmatpush1.bf16.msra.mxu0 %v1675
      %1698 = vmatprep.subr.bf16.mxu0 0
      %1699 = vmatpush1.bf16.msra.mxu0 %v1676
      %1700 = vmatprep.subr.bf16.mxu0 0
      %1701 = vmatpush1.bf16.msra.mxu0 %v1677
      %1702 = vmatprep.subr.bf16.mxu0 0
      %1703 = vmatpush1.bf16.msra.mxu0 0
      %1704 = vmatprep.subr.bf16.mxu0 0
      %1705 = vmatpush1.bf16.msra.mxu0 0
      %1706 = vmatprep.subr.bf16.mxu0 0
      %1707 = vmatpush1.bf16.msra.mxu0 0
      %1708 = vmatprep.subr.bf16.mxu0 0
      %1709 = vmatpush1.bf16.msra.mxu0 0
      %1710 = vmatprep.subr.bf16.mxu0 0
      %1711 = vmatpush1.bf16.msra.mxu0 0
      %1712 = vmatprep.subr.bf16.mxu0 0
      %1713 = vmatpush1.bf16.msra.mxu0 0
      %1714 = vmatprep.subr.bf16.mxu0 0
      %1715 = vmatpush1.bf16.msra.mxu0 0
      %1716 = vmatprep.subr.bf16.mxu0 0
      %1717 = vmatpush1.bf16.msra.mxu0 0
      %1718 = vmatprep.mubr.bf16.mxu0 0
      %1719 = vmatmul.mubr.bf16.gmra.mrb[0].mxu0 %v1610
      %v1720 = vpop.f32.mrb[0].mxu0
      %v1721 = vadd.f32 0.0, %v1720
      %v1722 = vpop.f32.mrb[0].mxu0
      %v1723 = vpop.f32.mrb[0].mxu0
      %v1724 = vadd.f32 0.0, %v1723
      %v1725 = vpop.f32.mrb[0].mxu0
      %1726 = vmatprep.mubr.bf16.mxu0 0
      %1727 = vmatmul.mubr.bf16.gmra.mrb[0].mxu0 %v1613
      %v1728 = vpop.f32.mrb[0].mxu0
      %v1729 = vadd.f32 0.0, %v1728
      %v1730 = vpop.f32.mrb[0].mxu0
      %v1731 = vpop.f32.mrb[0].mxu0
      %v1732 = vadd.f32 0.0, %v1731
      %v1733 = vpop.f32.mrb[0].mxu0
      %1734 = vmatprep.mubr.bf16.mxu0 0
      %1735 = vmatmul.mubr.bf16.gmra.mrb[0].mxu0 %v1616
      %v1736 = vpop.f32.mrb[0].mxu0
      %v1737 = vadd.f32 0.0, %v1736
      %v1738 = vpop.f32.mrb[0].mxu0
      %v1739 = vpop.f32.mrb[0].mxu0
      %v1740 = vadd.f32 0.0, %v1739
      %v1741 = vpop.f32.mrb[0].mxu0
      %1742 = vmatprep.mubr.bf16.mxu0 0
      %1743 = vmatmul.mubr.bf16.gmra.mrb[0].mxu0 %v1619
      %v1744 = vpop.f32.mrb[0].mxu0
      %v1745 = vadd.f32 0.0, %v1744
      %v1746 = vpop.f32.mrb[0].mxu0
      %v1747 = vpop.f32.mrb[0].mxu0
      %v1748 = vadd.f32 0.0, %v1747
      %v1749 = vpop.f32.mrb[0].mxu0
      %1750 = vdwg.mxu0
      %v1751 = vsel %vm758, %v1721, 0.0
      %v1752 = vsel %vm758, %v1724, 0.0
      %v1753 = vadd.f32 %v1751, %v1752
      %v1754 = vsel %vm758, %v1729, 0.0
      %v1755 = vadd.f32 %v1753, %v1754
      %v1756 = vsel %vm758, %v1732, 0.0
      %v1757 = vadd.f32 %v1755, %v1756
      %v1758 = vsel %vm758, %v1737, 0.0
      %v1759 = vadd.f32 %v1757, %v1758
      %v1760 = vsel %vm758, %v1740, 0.0
      %v1761 = vadd.f32 %v1759, %v1760
      %v1762 = vsel %vm758, %v1745, 0.0
      %v1763 = vadd.f32 %v1761, %v1762
      %v1764 = vsel %vm758, %v1748, 0.0
      %v1765 = vadd.f32 %v1763, %v1764
      %v1766 = vrot.slane %v1765, 4
      %v1767 = vadd.f32 %v1765, %v1766
      %v1768 = vrot.slane %v1767, 2
      %v1769 = vadd.f32 %v1767, %v1768
      %v1770 = vrot.slane %v1769, 1
      %v1771 = vadd.f32 %v1769, %v1770
      %v1772 = vadd.f32 %v1496, %v1771
      %v1773 = vrcp.pop 256.0
      %v1774 = vmul.f32 %v1772, %v1773
      %v1775 = vsub.f32 %v728, %v1774
      %v1776 = vsub.f32 %v731, %v1774
      %v1777 = vsub.f32 %v736, %v1774
      %v1778 = vsub.f32 %v739, %v1774
      %v1779 = vsub.f32 %v744, %v1774
      %v1780 = vsub.f32 %v747, %v1774
      %v1781 = vsub.f32 %v752, %v1774
      %v1782 = vsub.f32 %v755, %v1774
      %v1783 = vmul.f32 %v1775, %v1775
      %v1784 = vmul.f32 %v1776, %v1776
      %v1785 = vmul.f32 %v1777, %v1777
      %v1786 = vmul.f32 %v1778, %v1778
      %v1787 = vmul.f32 %v1779, %v1779
      %v1788 = vmul.f32 %v1780, %v1780
      %v1789 = vmul.f32 %v1781, %v1781
      %v1790 = vmul.f32 %v1782, %v1782
      %v1791 = vsel %vm758, %v1783, 0.0
      %v1792 = vsel %vm758, %v1784, 0.0
      %v1793 = vadd.f32 %v1791, %v1792
      %v1794 = vsel %vm758, %v1785, 0.0
      %v1795 = vadd.f32 %v1793, %v1794
      %v1796 = vsel %vm758, %v1786, 0.0
      %v1797 = vadd.f32 %v1795, %v1796
      %v1798 = vsel %vm758, %v1787, 0.0
      %v1799 = vadd.f32 %v1797, %v1798
      %v1800 = vsel %vm758, %v1788, 0.0
      %v1801 = vadd.f32 %v1799, %v1800
      %v1802 = vsel %vm758, %v1789, 0.0
      %v1803 = vadd.f32 %v1801, %v1802
      %v1804 = vsel %vm758, %v1790, 0.0
      %v1805 = vadd.f32 %v1803, %v1804
      %v1806 = vrot.slane %v1805, 4
      %v1807 = vadd.f32 %v1805, %v1806
      %v1808 = vrot.slane %v1807, 2
      %v1809 = vadd.f32 %v1807, %v1808
      %v1810 = vrot.slane %v1809, 1
      %v1811 = vadd.f32 %v1809, %v1810
      %v1812 = vadd.f32 %v1811, 0.0
      %v1813 = vsub.f32 %v1076, %v1774
      %v1814 = vsub.f32 %v1079, %v1774
      %v1815 = vsub.f32 %v1084, %v1774
      %v1816 = vsub.f32 %v1087, %v1774
      %v1817 = vsub.f32 %v1092, %v1774
      %v1818 = vsub.f32 %v1095, %v1774
      %v1819 = vsub.f32 %v1100, %v1774
      %v1820 = vsub.f32 %v1103, %v1774
      %v1821 = vmul.f32 %v1813, %v1813
      %v1822 = vmul.f32 %v1814, %v1814
      %v1823 = vmul.f32 %v1815, %v1815
      %v1824 = vmul.f32 %v1816, %v1816
      %v1825 = vmul.f32 %v1817, %v1817
      %v1826 = vmul.f32 %v1818, %v1818
      %v1827 = vmul.f32 %v1819, %v1819
      %v1828 = vmul.f32 %v1820, %v1820
      %v1829 = vsel %vm758, %v1821, 0.0
      %v1830 = vsel %vm758, %v1822, 0.0
      %v1831 = vadd.f32 %v1829, %v1830
      %v1832 = vsel %vm758, %v1823, 0.0
      %v1833 = vadd.f32 %v1831, %v1832
      %v1834 = vsel %vm758, %v1824, 0.0
      %v1835 = vadd.f32 %v1833, %v1834
      %v1836 = vsel %vm758, %v1825, 0.0
      %v1837 = vadd.f32 %v1835, %v1836
      %v1838 = vsel %vm758, %v1826, 0.0
      %v1839 = vadd.f32 %v1837, %v1838
      %v1840 = vsel %vm758, %v1827, 0.0
      %v1841 = vadd.f32 %v1839, %v1840
      %v1842 = vsel %vm758, %v1828, 0.0
      %v1843 = vadd.f32 %v1841, %v1842
      %v1844 = vrot.slane %v1843, 4
      %v1845 = vadd.f32 %v1843, %v1844
      %v1846 = vrot.slane %v1845, 2
      %v1847 = vadd.f32 %v1845, %v1846
      %v1848 = vrot.slane %v1847, 1
      %v1849 = vadd.f32 %v1847, %v1848
      %v1850 = vadd.f32 %v1812, %v1849
      %v1851 = vsub.f32 %v1445, %v1774
      %v1852 = vsub.f32 %v1448, %v1774
      %v1853 = vsub.f32 %v1453, %v1774
      %v1854 = vsub.f32 %v1456, %v1774
      %v1855 = vsub.f32 %v1461, %v1774
      %v1856 = vsub.f32 %v1464, %v1774
      %v1857 = vsub.f32 %v1469, %v1774
      %v1858 = vsub.f32 %v1472, %v1774
      %v1859 = vmul.f32 %v1851, %v1851
      %v1860 = vmul.f32 %v1852, %v1852
      %v1861 = vmul.f32 %v1853, %v1853
      %v1862 = vmul.f32 %v1854, %v1854
      %v1863 = vmul.f32 %v1855, %v1855
      %v1864 = vmul.f32 %v1856, %v1856
      %v1865 = vmul.f32 %v1857, %v1857
      %v1866 = vmul.f32 %v1858, %v1858
      %v1867 = vsel %vm758, %v1859, 0.0
      %v1868 = vsel %vm758, %v1860, 0.0
      %v1869 = vadd.f32 %v1867, %v1868
      %v1870 = vsel %vm758, %v1861, 0.0
      %v1871 = vadd.f32 %v1869, %v1870
      %v1872 = vsel %vm758, %v1862, 0.0
      %v1873 = vadd.f32 %v1871, %v1872
      %v1874 = vsel %vm758, %v1863, 0.0
      %v1875 = vadd.f32 %v1873, %v1874
      %v1876 = vsel %vm758, %v1864, 0.0
      %v1877 = vadd.f32 %v1875, %v1876
      %v1878 = vsel %vm758, %v1865, 0.0
      %v1879 = vadd.f32 %v1877, %v1878
      %v1880 = vsel %vm758, %v1866, 0.0
      %v1881 = vadd.f32 %v1879, %v1880
      %v1882 = vrot.slane %v1881, 4
      %v1883 = vadd.f32 %v1881, %v1882
      %v1884 = vrot.slane %v1883, 2
      %v1885 = vadd.f32 %v1883, %v1884
      %v1886 = vrot.slane %v1885, 1
      %v1887 = vadd.f32 %v1885, %v1886
      %v1888 = vadd.f32 %v1850, %v1887
      %v1889 = vsub.f32 %v1721, %v1774
      %v1890 = vsub.f32 %v1724, %v1774
      %v1891 = vsub.f32 %v1729, %v1774
      %v1892 = vsub.f32 %v1732, %v1774
      %v1893 = vsub.f32 %v1737, %v1774
      %v1894 = vsub.f32 %v1740, %v1774
      %v1895 = vsub.f32 %v1745, %v1774
      %v1896 = vsub.f32 %v1748, %v1774
      %v1897 = vmul.f32 %v1889, %v1889
      %v1898 = vmul.f32 %v1890, %v1890
      %v1899 = vmul.f32 %v1891, %v1891
      %v1900 = vmul.f32 %v1892, %v1892
      %v1901 = vmul.f32 %v1893, %v1893
      %v1902 = vmul.f32 %v1894, %v1894
      %v1903 = vmul.f32 %v1895, %v1895
      %v1904 = vmul.f32 %v1896, %v1896
      %v1905 = vsel %vm758, %v1897, 0.0
      %v1906 = vsel %vm758, %v1898, 0.0
      %v1907 = vadd.f32 %v1905, %v1906
      %v1908 = vsel %vm758, %v1899, 0.0
      %v1909 = vadd.f32 %v1907, %v1908
      %v1910 = vsel %vm758, %v1900, 0.0
      %v1911 = vadd.f32 %v1909, %v1910
      %v1912 = vsel %vm758, %v1901, 0.0
      %v1913 = vadd.f32 %v1911, %v1912
      %v1914 = vsel %vm758, %v1902, 0.0
      %v1915 = vadd.f32 %v1913, %v1914
      %v1916 = vsel %vm758, %v1903, 0.0
      %v1917 = vadd.f32 %v1915, %v1916
      %v1918 = vsel %vm758, %v1904, 0.0
      %v1919 = vadd.f32 %v1917, %v1918
      %v1920 = vrot.slane %v1919, 4
      %v1921 = vadd.f32 %v1919, %v1920
      %v1922 = vrot.slane %v1921, 2
      %v1923 = vadd.f32 %v1921, %v1922
      %v1924 = vrot.slane %v1923, 1
      %v1925 = vadd.f32 %v1923, %v1924
      %v1926 = vadd.f32 %v1888, %v1925
      %v1927 = vmul.f32 %v1926, %v1773
      %v1928 = vadd.f32 %v1927, 1e-05
      %v1929 = vrsqrt.pop %v1928
      %v1930 = vld [vmem:[%s3] sm:$0x1]
      %v1931 = vmul.f32 %v1929, %v1930
      %v1932 = vld [vmem:[%s4] sm:$0x1]
      %v1933 = vmul.f32 %v1774, %v1931
      %v1934 = vsub.f32 %v1932, %v1933
      %v1935 = vld [vmem:[%s239] sm:$0xff]
      %v1936 = vld [vmem:[%s239 + $0x10] sm:$0xff]
      %v1937 = vld [vmem:[%s239 + $0x20] sm:$0xff]
      %v1938 = vld [vmem:[%s239 + $0x30] sm:$0xff]
      %v1939 = vld [vmem:[%s239 + $0x40] sm:$0xff]
      %v1940 = vld [vmem:[%s239 + $0x50] sm:$0xff]
      %v1941 = vld [vmem:[%s239 + $0x60] sm:$0xff]
      %v1942 = vld [vmem:[%s239 + $0x70] sm:$0xff]
      %v1943 = vlaneseq
      %v1944 = vshrl.u32 %v1943, 7
      %v1945 = vsub.s32 0, %v1944
      %v1946 = vrot.slane %v1931, %v1945
      %v1947 = vmul.f32 %v728, %v1946
      %v1948 = vmul.f32 %v731, %v1946
      %v1949 = vmul.f32 %v736, %v1946
      %v1950 = vmul.f32 %v739, %v1946
      %v1951 = vmul.f32 %v744, %v1946
      %v1952 = vmul.f32 %v747, %v1946
      %v1953 = vmul.f32 %v752, %v1946
      %v1954 = vmul.f32 %v755, %v1946
      %v1956 = vlaneseq
      %v1957 = vshrl.u32 %v1956, 7
      %v1958 = vsub.s32 0, %v1957
      %v1959 = vrot.slane %v1934, %v1958
      %v1961 = vadd.f32 %v1947, %v1959
      %v1962 = vadd.f32 %v1948, %v1959
      %v1963 = vadd.f32 %v1949, %v1959
      %v1964 = vadd.f32 %v1950, %v1959
      %v1965 = vadd.f32 %v1951, %v1959
      %v1966 = vadd.f32 %v1952, %v1959
      %v1967 = vadd.f32 %v1953, %v1959
      %v1968 = vadd.f32 %v1954, %v1959
      %v1969 = vmul.f32 %v1076, %v1946
      %v1970 = vmul.f32 %v1079, %v1946
      %v1971 = vmul.f32 %v1084, %v1946
      %v1972 = vmul.f32 %v1087, %v1946
      %v1973 = vmul.f32 %v1092, %v1946
      %v1974 = vmul.f32 %v1095, %v1946
      %v1975 = vmul.f32 %v1100, %v1946
      %v1976 = vmul.f32 %v1103, %v1946
      %v1977 = vadd.f32 %v1969, %v1959
      %v1978 = vadd.f32 %v1970, %v1959
      %v1979 = vadd.f32 %v1971, %v1959
      %v1980 = vadd.f32 %v1972, %v1959
      %v1981 = vadd.f32 %v1973, %v1959
      %v1982 = vadd.f32 %v1974, %v1959
      %v1983 = vadd.f32 %v1975, %v1959
      %v1984 = vadd.f32 %v1976, %v1959
      %1993 = vrot.lane.b32.xlu0 %v1935, 16
      %v1994 = vpop.permute.xlu0 %1993
      %1995 = vrot.lane.b32.xlu0 %v1936, 16
      %v1996 = vpop.permute.xlu0 %1995
      %1997 = vrot.lane.b32.xlu0 %v1937, 16
      %v1998 = vpop.permute.xlu0 %1997
      %1999 = vrot.lane.b32.xlu0 %v1938, 16
      %v2000 = vpop.permute.xlu0 %1999
      %2001 = vrot.lane.b32.xlu0 %v1939, 16
      %v2002 = vpop.permute.xlu0 %2001
      %2003 = vrot.lane.b32.xlu0 %v1940, 16
      %v2004 = vpop.permute.xlu0 %2003
      %2005 = vrot.lane.b32.xlu0 %v1941, 16
      %v2006 = vpop.permute.xlu0 %2005
      %2007 = vrot.lane.b32.xlu0 %v1942, 16
      %v2008 = vpop.permute.xlu0 %2007
      %2025 = vrot.lane.b32.xlu0 %v1977, 32
      %v2026 = vpop.permute.xlu0 %2025
      %2027 = vrot.lane.b32.xlu0 %v1978, 32
      %v2028 = vpop.permute.xlu0 %2027
      %2029 = vrot.lane.b32.xlu0 %v1979, 32
      %v2030 = vpop.permute.xlu0 %2029
      %2031 = vrot.lane.b32.xlu0 %v1980, 32
      %v2032 = vpop.permute.xlu0 %2031
      %2033 = vrot.lane.b32.xlu0 %v1981, 32
      %v2034 = vpop.permute.xlu0 %2033
      %2035 = vrot.lane.b32.xlu0 %v1982, 32
      %v2036 = vpop.permute.xlu0 %2035
      %2037 = vrot.lane.b32.xlu0 %v1983, 32
      %v2038 = vpop.permute.xlu0 %2037
      %2039 = vrot.lane.b32.xlu0 %v1984, 32
      %v2040 = vpop.permute.xlu0 %2039
      %2049 = vrot.lane.b32.xlu0 %v1935, 32
      %v2050 = vpop.permute.xlu0 %2049
      %2051 = vrot.lane.b32.xlu0 %v1936, 32
      %v2052 = vpop.permute.xlu0 %2051
      %2053 = vrot.lane.b32.xlu0 %v1937, 32
      %v2054 = vpop.permute.xlu0 %2053
      %2055 = vrot.lane.b32.xlu0 %v1938, 32
      %v2056 = vpop.permute.xlu0 %2055
      %2057 = vrot.lane.b32.xlu0 %v1939, 32
      %v2058 = vpop.permute.xlu0 %2057
      %2059 = vrot.lane.b32.xlu0 %v1940, 32
      %v2060 = vpop.permute.xlu0 %2059
      %2061 = vrot.lane.b32.xlu0 %v1941, 32
      %v2062 = vpop.permute.xlu0 %2061
      %2063 = vrot.lane.b32.xlu0 %v1942, 32
      %v2064 = vpop.permute.xlu0 %2063
      %v2073 = vsel %vm758, %v1961, %v1994
      %v2074 = vsel %vm758, %v1962, %v1996
      %v2075 = vsel %vm758, %v1963, %v1998
      %v2076 = vsel %vm758, %v1964, %v2000
      %v2077 = vsel %vm758, %v1965, %v2002
      %v2078 = vsel %vm758, %v1966, %v2004
      %v2079 = vsel %vm758, %v1967, %v2006
      %v2080 = vsel %vm758, %v1968, %v2008
      %v2081 = vsel %vm594, %v2073, %v2026
      %v2082 = vsel %vm594, %v2074, %v2028
      %v2083 = vsel %vm594, %v2075, %v2030
      %v2084 = vsel %vm594, %v2076, %v2032
      %v2085 = vsel %vm594, %v2077, %v2034
      %v2086 = vsel %vm594, %v2078, %v2036
      %v2087 = vsel %vm594, %v2079, %v2038
      %v2088 = vsel %vm594, %v2080, %v2040
      %vm2089 = vcmask 392192
      %v2090 = vsel %vm2089, %v2081, %v2050
      %v2091 = vsel %vm2089, %v2082, %v2052
      %v2092 = vsel %vm2089, %v2083, %v2054
      %v2093 = vsel %vm2089, %v2084, %v2056
      %v2094 = vsel %vm2089, %v2085, %v2058
      %v2095 = vsel %vm2089, %v2086, %v2060
      %v2096 = vsel %vm2089, %v2087, %v2062
      %v2097 = vsel %vm2089, %v2088, %v2064
      %2098 = vst.msk [vmem:[%s244] sm:$0xff] %vm607, %v2090
      %2099 = vst.msk [vmem:[%s244 + $0x10] sm:$0xff] %vm607, %v2091
      %2100 = vst.msk [vmem:[%s244 + $0x20] sm:$0xff] %vm607, %v2092
      %2101 = vst.msk [vmem:[%s244 + $0x30] sm:$0xff] %vm607, %v2093
      %2102 = vst.msk [vmem:[%s244 + $0x40] sm:$0xff] %vm607, %v2094
      %2103 = vst.msk [vmem:[%s244 + $0x50] sm:$0xff] %vm607, %v2095
      %2104 = vst.msk [vmem:[%s244 + $0x60] sm:$0xff] %vm607, %v2096
      %2105 = vst.msk [vmem:[%s244 + $0x70] sm:$0xff] %vm607, %v2097
      %s2106 = scalar_lea.vmem %s239, 8
      %v2107 = vld [vmem:[%s2106] sm:$0xff]
      %v2108 = vld [vmem:[%s2106 + $0x10] sm:$0xff]
      %v2109 = vld [vmem:[%s2106 + $0x20] sm:$0xff]
      %v2110 = vld [vmem:[%s2106 + $0x30] sm:$0xff]
      %v2111 = vld [vmem:[%s2106 + $0x40] sm:$0xff]
      %v2112 = vld [vmem:[%s2106 + $0x50] sm:$0xff]
      %v2113 = vld [vmem:[%s2106 + $0x60] sm:$0xff]
      %v2114 = vld [vmem:[%s2106 + $0x70] sm:$0xff]
      %v2115 = vmul.f32 %v1445, %v1946
      %v2116 = vmul.f32 %v1448, %v1946
      %v2117 = vmul.f32 %v1453, %v1946
      %v2118 = vmul.f32 %v1456, %v1946
      %v2119 = vmul.f32 %v1461, %v1946
      %v2120 = vmul.f32 %v1464, %v1946
      %v2121 = vmul.f32 %v1469, %v1946
      %v2122 = vmul.f32 %v1472, %v1946
      %v2123 = vadd.f32 %v2115, %v1959
      %v2124 = vadd.f32 %v2116, %v1959
      %v2125 = vadd.f32 %v2117, %v1959
      %v2126 = vadd.f32 %v2118, %v1959
      %v2127 = vadd.f32 %v2119, %v1959
      %v2128 = vadd.f32 %v2120, %v1959
      %v2129 = vadd.f32 %v2121, %v1959
      %v2130 = vadd.f32 %v2122, %v1959
      %v2131 = vmul.f32 %v1721, %v1946
      %v2132 = vmul.f32 %v1724, %v1946
      %v2133 = vmul.f32 %v1729, %v1946
      %v2134 = vmul.f32 %v1732, %v1946
      %v2135 = vmul.f32 %v1737, %v1946
      %v2136 = vmul.f32 %v1740, %v1946
      %v2137 = vmul.f32 %v1745, %v1946
      %v2138 = vmul.f32 %v1748, %v1946
      %v2139 = vadd.f32 %v2131, %v1959
      %v2140 = vadd.f32 %v2132, %v1959
      %v2141 = vadd.f32 %v2133, %v1959
      %v2142 = vadd.f32 %v2134, %v1959
      %v2143 = vadd.f32 %v2135, %v1959
      %v2144 = vadd.f32 %v2136, %v1959
      %v2145 = vadd.f32 %v2137, %v1959
      %v2146 = vadd.f32 %v2138, %v1959
      %2155 = vrot.lane.b32.xlu0 %v2107, 16
      %v2156 = vpop.permute.xlu0 %2155
      %2157 = vrot.lane.b32.xlu0 %v2108, 16
      %v2158 = vpop.permute.xlu0 %2157
      %2159 = vrot.lane.b32.xlu0 %v2109, 16
      %v2160 = vpop.permute.xlu0 %2159
      %2161 = vrot.lane.b32.xlu0 %v2110, 16
      %v2162 = vpop.permute.xlu0 %2161
      %2163 = vrot.lane.b32.xlu0 %v2111, 16
      %v2164 = vpop.permute.xlu0 %2163
      %2165 = vrot.lane.b32.xlu0 %v2112, 16
      %v2166 = vpop.permute.xlu0 %2165
      %2167 = vrot.lane.b32.xlu0 %v2113, 16
      %v2168 = vpop.permute.xlu0 %2167
      %2169 = vrot.lane.b32.xlu0 %v2114, 16
      %v2170 = vpop.permute.xlu0 %2169
      %2187 = vrot.lane.b32.xlu0 %v2139, 32
      %v2188 = vpop.permute.xlu0 %2187
      %2189 = vrot.lane.b32.xlu0 %v2140, 32
      %v2190 = vpop.permute.xlu0 %2189
      %2191 = vrot.lane.b32.xlu0 %v2141, 32
      %v2192 = vpop.permute.xlu0 %2191
      %2193 = vrot.lane.b32.xlu0 %v2142, 32
      %v2194 = vpop.permute.xlu0 %2193
      %2195 = vrot.lane.b32.xlu0 %v2143, 32
      %v2196 = vpop.permute.xlu0 %2195
      %2197 = vrot.lane.b32.xlu0 %v2144, 32
      %v2198 = vpop.permute.xlu0 %2197
      %2199 = vrot.lane.b32.xlu0 %v2145, 32
      %v2200 = vpop.permute.xlu0 %2199
      %2201 = vrot.lane.b32.xlu0 %v2146, 32
      %v2202 = vpop.permute.xlu0 %2201
      %2211 = vrot.lane.b32.xlu0 %v2107, 32
      %v2212 = vpop.permute.xlu0 %2211
      %2213 = vrot.lane.b32.xlu0 %v2108, 32
      %v2214 = vpop.permute.xlu0 %2213
      %2215 = vrot.lane.b32.xlu0 %v2109, 32
      %v2216 = vpop.permute.xlu0 %2215
      %2217 = vrot.lane.b32.xlu0 %v2110, 32
      %v2218 = vpop.permute.xlu0 %2217
      %2219 = vrot.lane.b32.xlu0 %v2111, 32
      %v2220 = vpop.permute.xlu0 %2219
      %2221 = vrot.lane.b32.xlu0 %v2112, 32
      %v2222 = vpop.permute.xlu0 %2221
      %2223 = vrot.lane.b32.xlu0 %v2113, 32
      %v2224 = vpop.permute.xlu0 %2223
      %2225 = vrot.lane.b32.xlu0 %v2114, 32
      %v2226 = vpop.permute.xlu0 %2225
      %v2235 = vsel %vm758, %v2123, %v2156
      %v2236 = vsel %vm758, %v2124, %v2158
      %v2237 = vsel %vm758, %v2125, %v2160
      %v2238 = vsel %vm758, %v2126, %v2162
      %v2239 = vsel %vm758, %v2127, %v2164
      %v2240 = vsel %vm758, %v2128, %v2166
      %v2241 = vsel %vm758, %v2129, %v2168
      %v2242 = vsel %vm758, %v2130, %v2170
      %v2243 = vsel %vm594, %v2235, %v2188
      %v2244 = vsel %vm594, %v2236, %v2190
      %v2245 = vsel %vm594, %v2237, %v2192
      %v2246 = vsel %vm594, %v2238, %v2194
      %v2247 = vsel %vm594, %v2239, %v2196
      %v2248 = vsel %vm594, %v2240, %v2198
      %v2249 = vsel %vm594, %v2241, %v2200
      %v2250 = vsel %vm594, %v2242, %v2202
      %v2251 = vsel %vm2089, %v2243, %v2212
      %v2252 = vsel %vm2089, %v2244, %v2214
      %v2253 = vsel %vm2089, %v2245, %v2216
      %v2254 = vsel %vm2089, %v2246, %v2218
      %v2255 = vsel %vm2089, %v2247, %v2220
      %v2256 = vsel %vm2089, %v2248, %v2222
      %v2257 = vsel %vm2089, %v2249, %v2224
      %v2258 = vsel %vm2089, %v2250, %v2226
      %s2259 = scalar_lea.vmem %s244, 8
      %2260 = vst.msk [vmem:[%s2259] sm:$0xff] %vm607, %v2251
      %2261 = vst.msk [vmem:[%s2259 + $0x10] sm:$0xff] %vm607, %v2252
      %2262 = vst.msk [vmem:[%s2259 + $0x20] sm:$0xff] %vm607, %v2253
      %2263 = vst.msk [vmem:[%s2259 + $0x30] sm:$0xff] %vm607, %v2254
      %2264 = vst.msk [vmem:[%s2259 + $0x40] sm:$0xff] %vm607, %v2255
      %2265 = vst.msk [vmem:[%s2259 + $0x50] sm:$0xff] %vm607, %v2256
      %2266 = vst.msk [vmem:[%s2259 + $0x60] sm:$0xff] %vm607, %v2257
      %2267 = vst.msk [vmem:[%s2259 + $0x70] sm:$0xff] %vm607, %v2258
      %p2268 = scmp.lt.s32.totalorder %s16, 1
      %s2269 = scalar_select %p2268, %s16, 1
      %s2270 = smul.addr %s2269, 16
      %s2271 = smul.addr %s2270, 8
      %s2272 = scalar_lea.vmem %s5, %s2271
      // Predicated region
      $region41: #{unet_up_forward.1} parent=39 // pred_check
        %p2273 = pneg %p149
      $region42: #{unet_up_forward.1} parent=39 // pred_check_branch
        %2275 = sbr.rel (%p2273) target = $region44
      $region43: #{unet_up_forward.1} parent=39 // pred_region
        _
      $region44: #{unet_up_forward.1} parent=39 // pred_fallthru
        _
    $region40: #{unet_up_forward.1} parent=5 // pred_fallthru
      _
    %p2276 = scmp.le.s32.totalorder 2, %s11
    // Predicated region
    $region45: #{unet_up_forward.1} parent=5 // pred_check
      %p2277 = pneg %p2276
    $region46: #{unet_up_forward.1} parent=5 // pred_check_branch
      %2279 = sbr.rel (%p2277) target = $region48
    $region47: #{unet_up_forward.1} parent=5 // pred_region
      %s2280 = ssub.s32 %s11, 2
      // Predicated region
      $region49: #{unet_up_forward.1} parent=47 // pred_check
        %p2281 = pneg %p155
      $region50: #{unet_up_forward.1} parent=47 // pred_check_branch
        %2283 = sbr.rel (%p2281) target = $region52
      $region51: #{unet_up_forward.1} parent=47 // pred_region
        %p2284 = scmp.lt.s32.totalorder %s17, 1
        %s2285 = scalar_select %p2284, %s17, 1
        %s2286 = smul.addr %s2285, 16
        %s2287 = smul.addr %s2286, 8
        %s2288 = scalar_lea.vmem %s5, %s2287
      $region52: #{unet_up_forward.1} parent=47 // pred_fallthru
        _
    $region48: #{unet_up_forward.1} parent=5 // pred_fallthru
      _
  $region6: #{unet_up_forward.1} parent=0 // loop_footer
    %s15 = sadd.s32 1, %s11
  $region7: #{unet_up_forward.1} parent=0 // loop_footer_branch
    %10 = sbr.rel target = $region3
  $region8: #{unet_up_forward.1} parent=0 // loop_exit
    _

</llo_original>
